<compile_context>
chip_gen: v5e
topology: v5e:2x2
jax: 0.10.0
libtpu: 0.0.40
codegen_flags: <defaults>
</compile_context>

<pallas_src>
import math
import functools

import numpy as np
import jax
import jax.numpy as jnp
from jax import lax
from jax.experimental import pallas as pl
from jax.experimental.pallas import tpu as pltpu


# ----------------------------------------------------------------------------
# Constant operators for the torch `.view` head split / merge (built once, host)
# ----------------------------------------------------------------------------
def _head_view_operators(seq_len, embed_dim, num_heads):
    """0/1 operators implementing the naive (S, E) -> (H*S, D) row-major view.

    X3[i, d] = X[i // g, (i % g) * D + d],  g = E // D  (== num_heads)
      X3   = ((R @ X) * M) @ Z          (split,  exact element permutation)
      X    = R^T @ ((X3 @ Z^T) * M)     (merge,  exact inverse)
    BD is the block-diagonal "same head" mask for the (H*S, H*S) score matrix.
    """
    D = embed_dim // num_heads
    g = embed_dim // D
    HS = num_heads * seq_len
    i = np.arange(HS)[:, None]
    R = (np.arange(seq_len)[None, :] == (i // g)).astype(np.float32)              # (HS, S)
    M = ((np.arange(embed_dim)[None, :] // D) == (i % g)).astype(np.float32)      # (HS, E)
    Z = ((np.arange(embed_dim)[:, None] % D)
         == np.arange(D)[None, :]).astype(np.float32)                             # (E, D)
    BD = ((i // seq_len) == (i.T // seq_len)).astype(np.float32)                   # (HS, HS)
    return (R, np.ascontiguousarray(R.T), M, Z, np.ascontiguousarray(Z.T), BD)


# ----------------------------------------------------------------------------
# Fused Pallas kernel: QKV proj -> per-head top-k attention -> out proj
# ----------------------------------------------------------------------------
def fused_gsa_kernel(q_ref, k_ref, v_ref,
                     wq_ref, bq_ref, wk_ref, bk_ref, wv_ref, bv_ref,
                     wo_ref, bo_ref,
                     r_ref, rt_ref, m_ref, z_ref, zt_ref, bd_ref,
                     o_ref, *, topk):
    f32 = jnp.float32
    neg_inf = f32(-jnp.inf)

    # --- fused Q/K/V projections (MXU); 1/sqrt(D) already folded into wq/bq ---
    Qp = jnp.dot(q_ref[...], wq_ref[...], preferred_element_type=f32) + bq_ref[...]
    Kp = jnp.dot(k_ref[...], wk_ref[...], preferred_element_type=f32) + bk_ref[...]
    Vp = jnp.dot(v_ref[...], wv_ref[...], preferred_element_type=f32) + bv_ref[...]

    # --- naive head view (S, E) -> (H*S, D) as constant 0/1 matmuls (MXU) -----
    R, M, Z = r_ref[...], m_ref[...], z_ref[...]

    def to_heads(x):
        rep = jnp.dot(R, x, preferred_element_type=f32)            # (H*S, E)
        return jnp.dot(rep * M, Z, preferred_element_type=f32)     # (H*S, D)

    q3 = to_heads(Qp)
    k3 = to_heads(Kp)
    v3 = to_heads(Vp)

    # --- all heads' scores in ONE matmul; mask cross-head entries to -inf -----
    scores = lax.dot_general(q3, k3, (((1,), (1,)), ((), ())),
                             preferred_element_type=f32)           # (H*S, H*S)
    scores = jnp.where(bd_ref[...] > 0.5, scores, neg_inf)

    HS = scores.shape[-1]
    col = lax.broadcasted_iota(jnp.int32, scores.shape, 1)

    # --- torch.topk equivalent: iterative row max, ties -> lowest index -------
    work = scores
    sel_mask = jnp.zeros(scores.shape, dtype=jnp.bool_)
    for _ in range(topk):
        cur_max = jnp.max(work, axis=-1, keepdims=True)
        is_max = work == cur_max
        first = jnp.min(jnp.where(is_max, col, HS), axis=-1, keepdims=True)
        sel = col == first
        sel_mask = jnp.logical_or(sel_mask, sel)
        work = jnp.where(sel, neg_inf, work)

    # --- softmax over the selected (top-k) scores only -------------------------
    masked = jnp.where(sel_mask, scores, neg_inf)
    mrow = jnp.max(masked, axis=-1, keepdims=True)
    p = jnp.where(sel_mask, jnp.exp(masked - mrow), 0.0)
    probs = p / jnp.sum(p, axis=-1, keepdims=True)

    # --- probs @ V (block-diagonal probs => per-head mixing only) --------------
    ctx3 = jnp.dot(probs, v3, preferred_element_type=f32)           # (H*S, D)

    # --- inverse head view (H*S, D) -> (S, E), then fused output projection ----
    spread = jnp.dot(ctx3, zt_ref[...], preferred_element_type=f32)          # (H*S, E)
    ctx2d = jnp.dot(rt_ref[...], spread * M, preferred_element_type=f32)     # (S, E)
    y = jnp.dot(ctx2d, wo_ref[...], preferred_element_type=f32) + bo_ref[...]
    o_ref[...] = y.astype(o_ref.dtype)


# ----------------------------------------------------------------------------
# Module wrapper
# ----------------------------------------------------------------------------
def global_sparse_attention(q, k, v, params, *, num_heads, topk):
    B, S, E = q.shape
    D = E // num_heads
    topk = min(topk, S)   # torch.topk requires topk <= S; clamp defensively

    # Fold the 1/sqrt(D) attention scale into the Q projection.  (In production
    # this is a one-time parameter-prep transform; done here for self-containment.)
    scale = 1.0 / math.sqrt(D)
    wq = params["wq"] * scale
    bq = params["bq"] * scale

    R, RT, M, Z, ZT, BD = _head_view_operators(S, E, num_heads)
    HS = num_heads * S

    kernel = functools.partial(fused_gsa_kernel, topk=topk)
    batch_spec = pl.BlockSpec((None, S, E), lambda b: (b, 0, 0))

    def full(shape):
        return pl.BlockSpec(shape, lambda b: (0, 0))

    return pl.pallas_call(
        kernel,
        out_shape=jax.ShapeDtypeStruct((B, S, E), jnp.float32),
        grid=(B,),
        in_specs=[
            batch_spec, batch_spec, batch_spec,          # q, k, v   (per-batch blocks)
            full((E, E)), full((1, E)),                  # wq, bq  (pre-scaled)
            full((E, E)), full((1, E)),                  # wk, bk
            full((E, E)), full((1, E)),                  # wv, bv
            full((E, E)), full((1, E)),                  # wo, bo
            full((HS, S)), full((S, HS)),                # R, R^T
            full((HS, E)),                               # M
            full((E, D)), full((D, E)),                  # Z, Z^T
            full((HS, HS)),                              # block-diagonal head mask
        ],
        out_specs=batch_spec,
        compiler_params=pltpu.CompilerParams(
            dimension_semantics=("parallel",)),          # v7x: shard batches over 2 TCs
    )(
        q, k, v,
        wq, bq.reshape(1, E),
        params["wk"], params["bk"].reshape(1, E),
        params["wv"], params["bv"].reshape(1, E),
        params["wo"], params["bo"].reshape(1, E),
        jnp.asarray(R), jnp.asarray(RT), jnp.asarray(M),
        jnp.asarray(Z), jnp.asarray(ZT), jnp.asarray(BD),
    )


# ----------------------------------------------------------------------------
# Pure-JAX reference (mirrors the torch module op-for-op) for validation
# ----------------------------------------------------------------------------
def reference_forward(q, k, v, params, *, num_heads, topk):
    B, S, E = q.shape
    D = E // num_heads
    Qp = q.reshape(B * S, E) @ params["wq"] + params["bq"]
    Kp = k.reshape(B * S, E) @ params["wk"] + params["bk"]
    Vp = v.reshape(B * S, E) @ params["wv"] + params["bv"]
    Q = Qp.reshape(B, num_heads, S, D)
    K = Kp.reshape(B, num_heads, S, D)
    V = Vp.reshape(B, num_heads, S, D)

    scores = jnp.einsum("bhqd,bhkd->bhqk", Q, K) / math.sqrt(D)
    topk_scores, topk_idx = lax.top_k(scores, topk)                # (B,H,S,topk)
    probs = jax.nn.softmax(topk_scores, axis=-1)
    sel_v = jnp.take_along_axis(
        V[:, :, None, :, :], topk_idx[..., None], axis=3
    )                                                              # (B,H,S,topk,D)
    out = jnp.einsum("bhqk,bhqkd->bhqd", probs, sel_v)
    out = out.reshape(B, S, E)
    return out @ params["wo"] + params["bo"]


# ----------------------------------------------------------------------------
if __name__ == "__main__":
    B, S, E = 2, 8, 32
    num_heads, topk = 4, 4

    key = jax.random.PRNGKey(0)
    ks = jax.random.split(key, 11)

    # Deterministic synthetic parameters.  Weights stored as (in, out): y = xW + b.
    params = {
        "wq": 0.1 * jax.random.normal(ks[0], (E, E), jnp.float32),
        "bq": 0.1 * jax.random.normal(ks[1], (E,), jnp.float32),
        "wk": 0.1 * jax.random.normal(ks[2], (E, E), jnp.float32),
        "bk": 0.1 * jax.random.normal(ks[3], (E,), jnp.float32),
        "wv": 0.1 * jax.random.normal(ks[4], (E, E), jnp.float32),
        "bv": 0.1 * jax.random.normal(ks[5], (E,), jnp.float32),
        "wo": 0.1 * jax.random.normal(ks[6], (E, E), jnp.float32),
        "bo": 0.1 * jax.random.normal(ks[7], (E,), jnp.float32),
    }

    q = jax.random.normal(ks[8], (B, S, E), jnp.float32)
    k = jax.random.normal(ks[9], (B, S, E), jnp.float32)
    v = jax.random.normal(ks[10], (B, S, E), jnp.float32)

    out = global_sparse_attention(q, k, v, params, num_heads=num_heads, topk=topk)
    out = jax.block_until_ready(out)

    ref = reference_forward(q, k, v, params, num_heads=num_heads, topk=topk)
    ref = jax.block_until_ready(ref)

    assert out.shape == (B, S, E)
    assert np.allclose(np.asarray(out), np.asarray(ref), atol=1e-4, rtol=1e-4), (
        "mismatch vs reference"
    )
    print("KERNEL_OK")
</pallas_src>

<mosaic_0001>
module attributes {stable_mosaic.version = 11 : i64} {
  func.func @fused_gsa_kernel(%arg0: i32, %arg1: memref<1x8x32xf32, #tpu.memory_space<vmem>>, %arg2: memref<1x8x32xf32, #tpu.memory_space<vmem>>, %arg3: memref<1x8x32xf32, #tpu.memory_space<vmem>>, %arg4: memref<32x32xf32, #tpu.memory_space<vmem>>, %arg5: memref<1x32xf32, #tpu.memory_space<vmem>>, %arg6: memref<32x32xf32, #tpu.memory_space<vmem>>, %arg7: memref<1x32xf32, #tpu.memory_space<vmem>>, %arg8: memref<32x32xf32, #tpu.memory_space<vmem>>, %arg9: memref<1x32xf32, #tpu.memory_space<vmem>>, %arg10: memref<32x32xf32, #tpu.memory_space<vmem>>, %arg11: memref<1x32xf32, #tpu.memory_space<vmem>>, %arg12: memref<32x8xf32, #tpu.memory_space<vmem>>, %arg13: memref<8x32xf32, #tpu.memory_space<vmem>>, %arg14: memref<32x32xf32, #tpu.memory_space<vmem>>, %arg15: memref<32x8xf32, #tpu.memory_space<vmem>>, %arg16: memref<8x32xf32, #tpu.memory_space<vmem>>, %arg17: memref<32x32xf32, #tpu.memory_space<vmem>>, %arg18: memref<1x8x32xf32, #tpu.memory_space<vmem>>) attributes {dimension_semantics = [#tpu.dimension_semantics<parallel>], iteration_bounds = array<i64: 2>, scalar_prefetch = 0 : i64, scratch_operands = 0 : i64, tpu.core_type = #tpu.core_type<tc>, window_params = [{transform_indices = @transform_0, window_bounds = array<i64: 1, 8, 32>}, {transform_indices = @transform_1, window_bounds = array<i64: 1, 8, 32>}, {transform_indices = @transform_2, window_bounds = array<i64: 1, 8, 32>}, {pipeline_mode = #tpu.pipeline_mode<synchronous>, transform_indices = @transform_3, window_bounds = array<i64: 32, 32>}, {pipeline_mode = #tpu.pipeline_mode<synchronous>, transform_indices = @transform_4, window_bounds = array<i64: 1, 32>}, {pipeline_mode = #tpu.pipeline_mode<synchronous>, transform_indices = @transform_5, window_bounds = array<i64: 32, 32>}, {pipeline_mode = #tpu.pipeline_mode<synchronous>, transform_indices = @transform_6, window_bounds = array<i64: 1, 32>}, {pipeline_mode = #tpu.pipeline_mode<synchronous>, transform_indices = @transform_7, window_bounds = array<i64: 32, 32>}, {pipeline_mode = #tpu.pipeline_mode<synchronous>, transform_indices = @transform_8, window_bounds = array<i64: 1, 32>}, {pipeline_mode = #tpu.pipeline_mode<synchronous>, transform_indices = @transform_9, window_bounds = array<i64: 32, 32>}, {pipeline_mode = #tpu.pipeline_mode<synchronous>, transform_indices = @transform_10, window_bounds = array<i64: 1, 32>}, {pipeline_mode = #tpu.pipeline_mode<synchronous>, transform_indices = @transform_11, window_bounds = array<i64: 32, 8>}, {pipeline_mode = #tpu.pipeline_mode<synchronous>, transform_indices = @transform_12, window_bounds = array<i64: 8, 32>}, {pipeline_mode = #tpu.pipeline_mode<synchronous>, transform_indices = @transform_13, window_bounds = array<i64: 32, 32>}, {pipeline_mode = #tpu.pipeline_mode<synchronous>, transform_indices = @transform_14, window_bounds = array<i64: 32, 8>}, {pipeline_mode = #tpu.pipeline_mode<synchronous>, transform_indices = @transform_15, window_bounds = array<i64: 8, 32>}, {pipeline_mode = #tpu.pipeline_mode<synchronous>, transform_indices = @transform_16, window_bounds = array<i64: 32, 32>}, {transform_indices = @transform_17, window_bounds = array<i64: 1, 8, 32>}]} {
    %c0 = arith.constant 0 : index
    %c0_0 = arith.constant 0 : index
    %c0_1 = arith.constant 0 : index
    %0 = vector.load %arg1[%c0, %c0_0, %c0_1] : memref<1x8x32xf32, #tpu.memory_space<vmem>>, vector<1x8x32xf32>
    %1 = vector.shape_cast %0 : vector<1x8x32xf32> to vector<8x32xf32>
    %c0_2 = arith.constant 0 : index
    %c0_3 = arith.constant 0 : index
    %2 = vector.load %arg4[%c0_2, %c0_3] : memref<32x32xf32, #tpu.memory_space<vmem>>, vector<32x32xf32>
    %cst = arith.constant dense<0.000000e+00> : vector<8x32xf32>
    %3 = tpu.matmul %1, %2, %cst {dimension_numbers = #tpu.dot_dimension_numbers<[1], [0], [0], [1], [0, 0, 1, 1], [], []>} : vector<8x32xf32>, vector<32x32xf32>, vector<8x32xf32> -> vector<8x32xf32>
    %c0_4 = arith.constant 0 : index
    %c0_5 = arith.constant 0 : index
    %4 = vector.load %arg5[%c0_4, %c0_5] : memref<1x32xf32, #tpu.memory_space<vmem>>, vector<1x32xf32>
    %5 = vector.broadcast %4 : vector<1x32xf32> to vector<8x32xf32>
    %6 = arith.addf %3, %5 : vector<8x32xf32>
    %c0_6 = arith.constant 0 : index
    %c0_7 = arith.constant 0 : index
    %c0_8 = arith.constant 0 : index
    %7 = vector.load %arg2[%c0_6, %c0_7, %c0_8] : memref<1x8x32xf32, #tpu.memory_space<vmem>>, vector<1x8x32xf32>
    %8 = vector.shape_cast %7 : vector<1x8x32xf32> to vector<8x32xf32>
    %c0_9 = arith.constant 0 : index
    %c0_10 = arith.constant 0 : index
    %9 = vector.load %arg6[%c0_9, %c0_10] : memref<32x32xf32, #tpu.memory_space<vmem>>, vector<32x32xf32>
    %cst_11 = arith.constant dense<0.000000e+00> : vector<8x32xf32>
    %10 = tpu.matmul %8, %9, %cst_11 {dimension_numbers = #tpu.dot_dimension_numbers<[1], [0], [0], [1], [0, 0, 1, 1], [], []>} : vector<8x32xf32>, vector<32x32xf32>, vector<8x32xf32> -> vector<8x32xf32>
    %c0_12 = arith.constant 0 : index
    %c0_13 = arith.constant 0 : index
    %11 = vector.load %arg7[%c0_12, %c0_13] : memref<1x32xf32, #tpu.memory_space<vmem>>, vector<1x32xf32>
    %12 = vector.broadcast %11 : vector<1x32xf32> to vector<8x32xf32>
    %13 = arith.addf %10, %12 : vector<8x32xf32>
    %c0_14 = arith.constant 0 : index
    %c0_15 = arith.constant 0 : index
    %c0_16 = arith.constant 0 : index
    %14 = vector.load %arg3[%c0_14, %c0_15, %c0_16] : memref<1x8x32xf32, #tpu.memory_space<vmem>>, vector<1x8x32xf32>
    %15 = vector.shape_cast %14 : vector<1x8x32xf32> to vector<8x32xf32>
    %c0_17 = arith.constant 0 : index
    %c0_18 = arith.constant 0 : index
    %16 = vector.load %arg8[%c0_17, %c0_18] : memref<32x32xf32, #tpu.memory_space<vmem>>, vector<32x32xf32>
    %cst_19 = arith.constant dense<0.000000e+00> : vector<8x32xf32>
    %17 = tpu.matmul %15, %16, %cst_19 {dimension_numbers = #tpu.dot_dimension_numbers<[1], [0], [0], [1], [0, 0, 1, 1], [], []>} : vector<8x32xf32>, vector<32x32xf32>, vector<8x32xf32> -> vector<8x32xf32>
    %c0_20 = arith.constant 0 : index
    %c0_21 = arith.constant 0 : index
    %18 = vector.load %arg9[%c0_20, %c0_21] : memref<1x32xf32, #tpu.memory_space<vmem>>, vector<1x32xf32>
    %19 = vector.broadcast %18 : vector<1x32xf32> to vector<8x32xf32>
    %20 = arith.addf %17, %19 : vector<8x32xf32>
    %c0_22 = arith.constant 0 : index
    %c0_23 = arith.constant 0 : index
    %21 = vector.load %arg12[%c0_22, %c0_23] : memref<32x8xf32, #tpu.memory_space<vmem>>, vector<32x8xf32>
    %c0_24 = arith.constant 0 : index
    %c0_25 = arith.constant 0 : index
    %22 = vector.load %arg14[%c0_24, %c0_25] : memref<32x32xf32, #tpu.memory_space<vmem>>, vector<32x32xf32>
    %c0_26 = arith.constant 0 : index
    %c0_27 = arith.constant 0 : index
    %23 = vector.load %arg15[%c0_26, %c0_27] : memref<32x8xf32, #tpu.memory_space<vmem>>, vector<32x8xf32>
    %cst_28 = arith.constant dense<0.000000e+00> : vector<32x32xf32>
    %24 = tpu.matmul %21, %6, %cst_28 {dimension_numbers = #tpu.dot_dimension_numbers<[1], [0], [0], [1], [0, 0, 1, 1], [], []>} : vector<32x8xf32>, vector<8x32xf32>, vector<32x32xf32> -> vector<32x32xf32>
    %25 = arith.mulf %24, %22 : vector<32x32xf32>
    %cst_29 = arith.constant dense<0.000000e+00> : vector<32x8xf32>
    %26 = tpu.matmul %25, %23, %cst_29 {dimension_numbers = #tpu.dot_dimension_numbers<[1], [0], [0], [1], [0, 0, 1, 1], [], []>} : vector<32x32xf32>, vector<32x8xf32>, vector<32x8xf32> -> vector<32x8xf32>
    %cst_30 = arith.constant dense<0.000000e+00> : vector<32x32xf32>
    %27 = tpu.matmul %21, %13, %cst_30 {dimension_numbers = #tpu.dot_dimension_numbers<[1], [0], [0], [1], [0, 0, 1, 1], [], []>} : vector<32x8xf32>, vector<8x32xf32>, vector<32x32xf32> -> vector<32x32xf32>
    %28 = arith.mulf %27, %22 : vector<32x32xf32>
    %cst_31 = arith.constant dense<0.000000e+00> : vector<32x8xf32>
    %29 = tpu.matmul %28, %23, %cst_31 {dimension_numbers = #tpu.dot_dimension_numbers<[1], [0], [0], [1], [0, 0, 1, 1], [], []>} : vector<32x32xf32>, vector<32x8xf32>, vector<32x8xf32> -> vector<32x8xf32>
    %cst_32 = arith.constant dense<0.000000e+00> : vector<32x32xf32>
    %30 = tpu.matmul %21, %20, %cst_32 {dimension_numbers = #tpu.dot_dimension_numbers<[1], [0], [0], [1], [0, 0, 1, 1], [], []>} : vector<32x8xf32>, vector<8x32xf32>, vector<32x32xf32> -> vector<32x32xf32>
    %31 = arith.mulf %30, %22 : vector<32x32xf32>
    %cst_33 = arith.constant dense<0.000000e+00> : vector<32x8xf32>
    %32 = tpu.matmul %31, %23, %cst_33 {dimension_numbers = #tpu.dot_dimension_numbers<[1], [0], [0], [1], [0, 0, 1, 1], [], []>} : vector<32x32xf32>, vector<32x8xf32>, vector<32x8xf32> -> vector<32x8xf32>
    %cst_34 = arith.constant dense<0.000000e+00> : vector<32x32xf32>
    %33 = tpu.matmul %26, %29, %cst_34 {dimension_numbers = #tpu.dot_dimension_numbers<[1], [1], [0], [0], [0, 0, 1, 0], [], []>} : vector<32x8xf32>, vector<32x8xf32>, vector<32x32xf32> -> vector<32x32xf32>
    %c0_35 = arith.constant 0 : index
    %c0_36 = arith.constant 0 : index
    %34 = vector.load %arg17[%c0_35, %c0_36] : memref<32x32xf32, #tpu.memory_space<vmem>>, vector<32x32xf32>
    %cst_37 = arith.constant 5.000000e-01 : f32
    %35 = vector.broadcast %cst_37 : f32 to vector<32x32xf32>
    %36 = arith.cmpf ogt, %34, %35 : vector<32x32xf32>
    %cst_38 = arith.constant 0xFF800000 : f32
    %37 = vector.broadcast %cst_38 : f32 to vector<32x32xf32>
    %38 = arith.select %36, %33, %37 : vector<32x32xi1>, vector<32x32xf32>
    %39 = tpu.iota {dimensions = array<i32: 1>} : vector<32x32xi32>
    %false = arith.constant false
    %40 = vector.broadcast %false : i1 to vector<32x32xi1>
    %cst_39 = arith.constant dense<0xFF800000> : vector<32xf32>
    %41 = vector.multi_reduction <maximumf>, %38, %cst_39 [1] : vector<32x32xf32> to vector<32xf32>
    %42 = vector.shape_cast %41 : vector<32xf32> to vector<32x1xf32>
    %43 = vector.broadcast %42 : vector<32x1xf32> to vector<32x32xf32>
    %44 = arith.cmpf oeq, %38, %43 : vector<32x32xf32>
    %c32_i32 = arith.constant 32 : i32
    %45 = vector.broadcast %c32_i32 : i32 to vector<32x32xi32>
    %46 = arith.select %44, %39, %45 : vector<32x32xi1>, vector<32x32xi32>
    %cst_40 = arith.constant dense<2147483647> : vector<32xi32>
    %47 = vector.multi_reduction <minsi>, %46, %cst_40 [1] : vector<32x32xi32> to vector<32xi32>
    %48 = vector.shape_cast %47 : vector<32xi32> to vector<32x1xi32>
    %49 = vector.broadcast %48 : vector<32x1xi32> to vector<32x32xi32>
    %50 = arith.cmpi eq, %39, %49 : vector<32x32xi32>
    %51 = arith.ori %40, %50 : vector<32x32xi1>
    %cst_41 = arith.constant 0xFF800000 : f32
    %52 = vector.broadcast %cst_41 : f32 to vector<32x32xf32>
    %53 = arith.select %50, %52, %38 : vector<32x32xi1>, vector<32x32xf32>
    %cst_42 = arith.constant dense<0xFF800000> : vector<32xf32>
    %54 = vector.multi_reduction <maximumf>, %53, %cst_42 [1] : vector<32x32xf32> to vector<32xf32>
    %55 = vector.shape_cast %54 : vector<32xf32> to vector<32x1xf32>
    %56 = vector.broadcast %55 : vector<32x1xf32> to vector<32x32xf32>
    %57 = arith.cmpf oeq, %53, %56 : vector<32x32xf32>
    %c32_i32_43 = arith.constant 32 : i32
    %58 = vector.broadcast %c32_i32_43 : i32 to vector<32x32xi32>
    %59 = arith.select %57, %39, %58 : vector<32x32xi1>, vector<32x32xi32>
    %cst_44 = arith.constant dense<2147483647> : vector<32xi32>
    %60 = vector.multi_reduction <minsi>, %59, %cst_44 [1] : vector<32x32xi32> to vector<32xi32>
    %61 = vector.shape_cast %60 : vector<32xi32> to vector<32x1xi32>
    %62 = vector.broadcast %61 : vector<32x1xi32> to vector<32x32xi32>
    %63 = arith.cmpi eq, %39, %62 : vector<32x32xi32>
    %64 = arith.ori %51, %63 : vector<32x32xi1>
    %cst_45 = arith.constant 0xFF800000 : f32
    %65 = vector.broadcast %cst_45 : f32 to vector<32x32xf32>
    %66 = arith.select %63, %65, %53 : vector<32x32xi1>, vector<32x32xf32>
    %cst_46 = arith.constant dense<0xFF800000> : vector<32xf32>
    %67 = vector.multi_reduction <maximumf>, %66, %cst_46 [1] : vector<32x32xf32> to vector<32xf32>
    %68 = vector.shape_cast %67 : vector<32xf32> to vector<32x1xf32>
    %69 = vector.broadcast %68 : vector<32x1xf32> to vector<32x32xf32>
    %70 = arith.cmpf oeq, %66, %69 : vector<32x32xf32>
    %c32_i32_47 = arith.constant 32 : i32
    %71 = vector.broadcast %c32_i32_47 : i32 to vector<32x32xi32>
    %72 = arith.select %70, %39, %71 : vector<32x32xi1>, vector<32x32xi32>
    %cst_48 = arith.constant dense<2147483647> : vector<32xi32>
    %73 = vector.multi_reduction <minsi>, %72, %cst_48 [1] : vector<32x32xi32> to vector<32xi32>
    %74 = vector.shape_cast %73 : vector<32xi32> to vector<32x1xi32>
    %75 = vector.broadcast %74 : vector<32x1xi32> to vector<32x32xi32>
    %76 = arith.cmpi eq, %39, %75 : vector<32x32xi32>
    %77 = arith.ori %64, %76 : vector<32x32xi1>
    %cst_49 = arith.constant 0xFF800000 : f32
    %78 = vector.broadcast %cst_49 : f32 to vector<32x32xf32>
    %79 = arith.select %76, %78, %66 : vector<32x32xi1>, vector<32x32xf32>
    %cst_50 = arith.constant dense<0xFF800000> : vector<32xf32>
    %80 = vector.multi_reduction <maximumf>, %79, %cst_50 [1] : vector<32x32xf32> to vector<32xf32>
    %81 = vector.shape_cast %80 : vector<32xf32> to vector<32x1xf32>
    %82 = vector.broadcast %81 : vector<32x1xf32> to vector<32x32xf32>
    %83 = arith.cmpf oeq, %79, %82 : vector<32x32xf32>
    %c32_i32_51 = arith.constant 32 : i32
    %84 = vector.broadcast %c32_i32_51 : i32 to vector<32x32xi32>
    %85 = arith.select %83, %39, %84 : vector<32x32xi1>, vector<32x32xi32>
    %cst_52 = arith.constant dense<2147483647> : vector<32xi32>
    %86 = vector.multi_reduction <minsi>, %85, %cst_52 [1] : vector<32x32xi32> to vector<32xi32>
    %87 = vector.shape_cast %86 : vector<32xi32> to vector<32x1xi32>
    %88 = vector.broadcast %87 : vector<32x1xi32> to vector<32x32xi32>
    %89 = arith.cmpi eq, %39, %88 : vector<32x32xi32>
    %90 = arith.ori %77, %89 : vector<32x32xi1>
    %cst_53 = arith.constant 0xFF800000 : f32
    %91 = vector.broadcast %cst_53 : f32 to vector<32x32xf32>
    %92 = arith.select %90, %38, %91 : vector<32x32xi1>, vector<32x32xf32>
    %cst_54 = arith.constant dense<0xFF800000> : vector<32xf32>
    %93 = vector.multi_reduction <maximumf>, %92, %cst_54 [1] : vector<32x32xf32> to vector<32xf32>
    %94 = vector.shape_cast %93 : vector<32xf32> to vector<32x1xf32>
    %95 = vector.broadcast %94 : vector<32x1xf32> to vector<32x32xf32>
    %96 = arith.subf %92, %95 : vector<32x32xf32>
    %97 = math.exp %96 : vector<32x32xf32>
    %cst_55 = arith.constant 0.000000e+00 : f32
    %98 = vector.broadcast %cst_55 : f32 to vector<32x32xf32>
    %99 = arith.select %90, %97, %98 : vector<32x32xi1>, vector<32x32xf32>
    %cst_56 = arith.constant dense<0.000000e+00> : vector<32xf32>
    %100 = vector.multi_reduction <add>, %99, %cst_56 [1] : vector<32x32xf32> to vector<32xf32>
    %101 = vector.shape_cast %100 : vector<32xf32> to vector<32x1xf32>
    %102 = vector.broadcast %101 : vector<32x1xf32> to vector<32x32xf32>
    %103 = arith.divf %99, %102 : vector<32x32xf32>
    %cst_57 = arith.constant dense<0.000000e+00> : vector<32x8xf32>
    %104 = tpu.matmul %103, %32, %cst_57 {dimension_numbers = #tpu.dot_dimension_numbers<[1], [0], [0], [1], [0, 0, 1, 1], [], []>} : vector<32x32xf32>, vector<32x8xf32>, vector<32x8xf32> -> vector<32x8xf32>
    %c0_58 = arith.constant 0 : index
    %c0_59 = arith.constant 0 : index
    %105 = vector.load %arg16[%c0_58, %c0_59] : memref<8x32xf32, #tpu.memory_space<vmem>>, vector<8x32xf32>
    %cst_60 = arith.constant dense<0.000000e+00> : vector<32x32xf32>
    %106 = tpu.matmul %104, %105, %cst_60 {dimension_numbers = #tpu.dot_dimension_numbers<[1], [0], [0], [1], [0, 0, 1, 1], [], []>} : vector<32x8xf32>, vector<8x32xf32>, vector<32x32xf32> -> vector<32x32xf32>
    %c0_61 = arith.constant 0 : index
    %c0_62 = arith.constant 0 : index
    %107 = vector.load %arg13[%c0_61, %c0_62] : memref<8x32xf32, #tpu.memory_space<vmem>>, vector<8x32xf32>
    %108 = arith.mulf %106, %22 : vector<32x32xf32>
    %cst_63 = arith.constant dense<0.000000e+00> : vector<8x32xf32>
    %109 = tpu.matmul %107, %108, %cst_63 {dimension_numbers = #tpu.dot_dimension_numbers<[1], [0], [0], [1], [0, 0, 1, 1], [], []>} : vector<8x32xf32>, vector<32x32xf32>, vector<8x32xf32> -> vector<8x32xf32>
    %c0_64 = arith.constant 0 : index
    %c0_65 = arith.constant 0 : index
    %110 = vector.load %arg10[%c0_64, %c0_65] : memref<32x32xf32, #tpu.memory_space<vmem>>, vector<32x32xf32>
    %cst_66 = arith.constant dense<0.000000e+00> : vector<8x32xf32>
    %111 = tpu.matmul %109, %110, %cst_66 {dimension_numbers = #tpu.dot_dimension_numbers<[1], [0], [0], [1], [0, 0, 1, 1], [], []>} : vector<8x32xf32>, vector<32x32xf32>, vector<8x32xf32> -> vector<8x32xf32>
    %c0_67 = arith.constant 0 : index
    %c0_68 = arith.constant 0 : index
    %112 = vector.load %arg11[%c0_67, %c0_68] : memref<1x32xf32, #tpu.memory_space<vmem>>, vector<1x32xf32>
    %113 = vector.broadcast %112 : vector<1x32xf32> to vector<8x32xf32>
    %114 = arith.addf %111, %113 : vector<8x32xf32>
    %c0_69 = arith.constant 0 : index
    %c0_70 = arith.constant 0 : index
    %c0_71 = arith.constant 0 : index
    %115 = vector.load %arg18[%c0_69, %c0_70, %c0_71] : memref<1x8x32xf32, #tpu.memory_space<vmem>>, vector<1x8x32xf32>
    %116 = vector.shape_cast %115 : vector<1x8x32xf32> to vector<8x32xf32>
    %117 = vector.shape_cast %114 : vector<8x32xf32> to vector<1x8x32xf32>
    tpu.vector_store %arg18[%c0_69, %c0_70, %c0_71], %117 {strides = array<i32>} : memref<1x8x32xf32, #tpu.memory_space<vmem>>, vector<1x8x32xf32>,
    return
  }
  func.func @transform_0(%arg0: i32) -> (i32, i32, i32) {
    %c0_i32 = arith.constant 0 : i32
    %c0_i32_0 = arith.constant 0 : i32
    %c0_i32_1 = arith.constant 0 : i32
    return %arg0, %c0_i32, %c0_i32_0 : i32, i32, i32
  }
  func.func @transform_1(%arg0: i32) -> (i32, i32, i32) {
    %c0_i32 = arith.constant 0 : i32
    %c0_i32_0 = arith.constant 0 : i32
    %c0_i32_1 = arith.constant 0 : i32
    return %arg0, %c0_i32, %c0_i32_0 : i32, i32, i32
  }
  func.func @transform_2(%arg0: i32) -> (i32, i32, i32) {
    %c0_i32 = arith.constant 0 : i32
    %c0_i32_0 = arith.constant 0 : i32
    %c0_i32_1 = arith.constant 0 : i32
    return %arg0, %c0_i32, %c0_i32_0 : i32, i32, i32
  }
  func.func @transform_3(%arg0: i32) -> (i32, i32) {
    %c0_i32 = arith.constant 0 : i32
    %c0_i32_0 = arith.constant 0 : i32
    %c0_i32_1 = arith.constant 0 : i32
    return %c0_i32, %c0_i32_0 : i32, i32
  }
  func.func @transform_4(%arg0: i32) -> (i32, i32) {
    %c0_i32 = arith.constant 0 : i32
    %c0_i32_0 = arith.constant 0 : i32
    %c0_i32_1 = arith.constant 0 : i32
    return %c0_i32, %c0_i32_0 : i32, i32
  }
  func.func @transform_5(%arg0: i32) -> (i32, i32) {
    %c0_i32 = arith.constant 0 : i32
    %c0_i32_0 = arith.constant 0 : i32
    %c0_i32_1 = arith.constant 0 : i32
    return %c0_i32, %c0_i32_0 : i32, i32
  }
  func.func @transform_6(%arg0: i32) -> (i32, i32) {
    %c0_i32 = arith.constant 0 : i32
    %c0_i32_0 = arith.constant 0 : i32
    %c0_i32_1 = arith.constant 0 : i32
    return %c0_i32, %c0_i32_0 : i32, i32
  }
  func.func @transform_7(%arg0: i32) -> (i32, i32) {
    %c0_i32 = arith.constant 0 : i32
    %c0_i32_0 = arith.constant 0 : i32
    %c0_i32_1 = arith.constant 0 : i32
    return %c0_i32, %c0_i32_0 : i32, i32
  }
  func.func @transform_8(%arg0: i32) -> (i32, i32) {
    %c0_i32 = arith.constant 0 : i32
    %c0_i32_0 = arith.constant 0 : i32
    %c0_i32_1 = arith.constant 0 : i32
    return %c0_i32, %c0_i32_0 : i32, i32
  }
  func.func @transform_9(%arg0: i32) -> (i32, i32) {
    %c0_i32 = arith.constant 0 : i32
    %c0_i32_0 = arith.constant 0 : i32
    %c0_i32_1 = arith.constant 0 : i32
    return %c0_i32, %c0_i32_0 : i32, i32
  }
  func.func @transform_10(%arg0: i32) -> (i32, i32) {
    %c0_i32 = arith.constant 0 : i32
    %c0_i32_0 = arith.constant 0 : i32
    %c0_i32_1 = arith.constant 0 : i32
    return %c0_i32, %c0_i32_0 : i32, i32
  }
  func.func @transform_11(%arg0: i32) -> (i32, i32) {
    %c0_i32 = arith.constant 0 : i32
    %c0_i32_0 = arith.constant 0 : i32
    %c0_i32_1 = arith.constant 0 : i32
    return %c0_i32, %c0_i32_0 : i32, i32
  }
  func.func @transform_12(%arg0: i32) -> (i32, i32) {
    %c0_i32 = arith.constant 0 : i32
    %c0_i32_0 = arith.constant 0 : i32
    %c0_i32_1 = arith.constant 0 : i32
    return %c0_i32, %c0_i32_0 : i32, i32
  }
  func.func @transform_13(%arg0: i32) -> (i32, i32) {
    %c0_i32 = arith.constant 0 : i32
    %c0_i32_0 = arith.constant 0 : i32
    %c0_i32_1 = arith.constant 0 : i32
    return %c0_i32, %c0_i32_0 : i32, i32
  }
  func.func @transform_14(%arg0: i32) -> (i32, i32) {
    %c0_i32 = arith.constant 0 : i32
    %c0_i32_0 = arith.constant 0 : i32
    %c0_i32_1 = arith.constant 0 : i32
    return %c0_i32, %c0_i32_0 : i32, i32
  }
  func.func @transform_15(%arg0: i32) -> (i32, i32) {
    %c0_i32 = arith.constant 0 : i32
    %c0_i32_0 = arith.constant 0 : i32
    %c0_i32_1 = arith.constant 0 : i32
    return %c0_i32, %c0_i32_0 : i32, i32
  }
  func.func @transform_16(%arg0: i32) -> (i32, i32) {
    %c0_i32 = arith.constant 0 : i32
    %c0_i32_0 = arith.constant 0 : i32
    %c0_i32_1 = arith.constant 0 : i32
    return %c0_i32, %c0_i32_0 : i32, i32
  }
  func.func @transform_17(%arg0: i32) -> (i32, i32, i32) {
    %c0_i32 = arith.constant 0 : i32
    %c0_i32_0 = arith.constant 0 : i32
    %c0_i32_1 = arith.constant 0 : i32
    return %arg0, %c0_i32, %c0_i32_0 : i32, i32, i32
  }
}

</mosaic_0001>

<llo_original>
// kernel: tpu_custom_call.1
$region0: #{tpu_custom_call.1}
  #allocation0 [shape = 'u32[]', space=smem, size = 0x4, offset = 0x4, fixed_abs, tag = 'smem constant byte address 0x4 - core index']
  #allocation1 [shape = 'u32[72,128]{1,0:T(1,128)}', space=vmem, size = 0x9000, scoped, tag = 'internal scratch']
  %s0 = inlined_call_operand.hbm [shape: f32[2,8,32], index: 0, kind: input, shape index: {}]
  %s1 = inlined_call_operand.hbm [shape: f32[2,8,32], index: 1, kind: input, shape index: {}]
  %s2 = inlined_call_operand.hbm [shape: f32[2,8,32], index: 2, kind: input, shape index: {}]
  %s3 = inlined_call_operand.vmem [shape: f32[32,32], index: 3, kind: input, shape index: {}]
  %s4 = inlined_call_operand.vmem [shape: f32[1,32], index: 4, kind: input, shape index: {}]
  %s5 = inlined_call_operand.vmem [shape: f32[32,32], index: 5, kind: input, shape index: {}]
  %s6 = inlined_call_operand.vmem [shape: f32[1,32], index: 6, kind: input, shape index: {}]
  %s7 = inlined_call_operand.hbm [shape: f32[32,32], index: 7, kind: input, shape index: {}]
  %s8 = inlined_call_operand.hbm [shape: f32[1,32], index: 8, kind: input, shape index: {}]
  %s9 = inlined_call_operand.hbm [shape: f32[32,32], index: 9, kind: input, shape index: {}]
  %s10 = inlined_call_operand.hbm [shape: f32[1,32], index: 10, kind: input, shape index: {}]
  %s11 = inlined_call_operand.vmem [shape: f32[32,8], index: 11, kind: input, shape index: {}]
  %s12 = inlined_call_operand.vmem [shape: f32[8,32], index: 12, kind: input, shape index: {}]
  %s13 = inlined_call_operand.hbm [shape: f32[32,32], index: 13, kind: input, shape index: {}]
  %s14 = inlined_call_operand.vmem [shape: f32[32,8], index: 14, kind: input, shape index: {}]
  %s15 = inlined_call_operand.hbm [shape: f32[8,32], index: 15, kind: input, shape index: {}]
  %s16 = inlined_call_operand.hbm [shape: f32[32,32], index: 16, kind: input, shape index: {}]
  %s17 = inlined_call_operand.hbm [shape: f32[2,8,32], index: 17, kind: output, shape index: {}]
  %s18 = sld [smem:[#allocation0]]
  $region141: #{tpu_custom_call.1} parent=0
    _
  %s20 = ssub.s32 1, %s18
  %s21 = scalar_select 0, %s20, %s18
  $region1: #{tpu_custom_call.1} parent=0
    #allocation2 [shape = 'u8[8192]{0}', space=vmem, size = 0x2000, scoped, tag = 'input window, operand 0']
    #allocation3 [shape = 's32[2]{0}', space=sflag, size = 0x8, scoped, tag = 'scoped memory for tpu_custom_call.1']
    #allocation4 [shape = 's32[2]{0}', space=sflag, size = 0x8, scoped, tag = 'scoped memory for tpu_custom_call.1']
    #allocation5 [shape = 'u8[8192]{0}', space=vmem, size = 0x2000, scoped, tag = 'input window, operand 1']
    #allocation6 [shape = 's32[2]{0}', space=sflag, size = 0x8, scoped, tag = 'scoped memory for tpu_custom_call.1']
    #allocation7 [shape = 'u8[8192]{0}', space=vmem, size = 0x2000, scoped, tag = 'input window, operand 2']
    #allocation8 [shape = 'u8[16384]{0}', space=vmem, size = 0x4000, scoped, tag = 'input window, operand 7, single buffered']
    #allocation9 [shape = 's32[1]{0}', space=sflag, size = 0x4, scoped, tag = 'scoped memory for tpu_custom_call.1']
    #allocation10 [shape = 'u8[512]{0}', space=vmem, size = 0x400, scoped, tag = 'input window, operand 8, single buffered']
    #allocation11 [shape = 'u8[16384]{0}', space=vmem, size = 0x4000, scoped, tag = 'input window, operand 9, single buffered']
    #allocation12 [shape = 's32[1]{0}', space=sflag, size = 0x4, scoped, tag = 'scoped memory for tpu_custom_call.1']
    #allocation13 [shape = 'u8[512]{0}', space=vmem, size = 0x400, scoped, tag = 'input window, operand 10, single buffered']
    #allocation14 [shape = 'u8[16384]{0}', space=vmem, size = 0x4000, scoped, tag = 'input window, operand 13, single buffered']
    #allocation15 [shape = 's32[1]{0}', space=sflag, size = 0x4, scoped, tag = 'scoped memory for tpu_custom_call.1']
    #allocation16 [shape = 'u8[4096]{0}', space=vmem, size = 0x1000, scoped, tag = 'input window, operand 15, single buffered']
    #allocation17 [shape = 'u8[16384]{0}', space=vmem, size = 0x4000, scoped, tag = 'input window, operand 16, single buffered']
    #allocation18 [shape = 's32[1]{0}', space=sflag, size = 0x4, scoped, tag = 'scoped memory for tpu_custom_call.1']
    #allocation19 [shape = 'u8[8192]{0}', space=vmem, size = 0x2000, scoped, tag = 'output window, operand 0']
    %22 = vsyncpa [#allocation3], 0
    %s23 = scalar_lea.sflag [#allocation3], 1
    %24 = vsyncpa %s23, 0
    %25 = vsyncpa [#allocation6], 0
    %s26 = scalar_lea.sflag [#allocation6], 1
    %27 = vsyncpa %s26, 0
    %28 = vsyncpa [#allocation9], 0
    %29 = vsyncpa [#allocation12], 0
    %30 = vsyncpa [#allocation15], 0
    %31 = vsyncpa [#allocation18], 0
    %32 = vsyncpa [#allocation4], 0
    %s33 = scalar_lea.sflag [#allocation4], 1
    %34 = vsyncpa %s33, 0
    loop: start=0, step=1, limit=4
    $region2: #{tpu_custom_call.1} parent=1 // loop_pre_header
      _
    $region3: #{tpu_custom_call.1} parent=1 // loop_header
      %s36 = sphi 0, %s40
      %p37 = scmp.ge.s32.totalorder %s36, 4
      %s46 = sphi 0, %s48
      %s49 = sphi 0, %s46
      %s50 = sphi 0, %s49
      %s66 = sphi 0, %s50
      %s72 = sphi 0, %s74
      %s75 = sphi 0, %s72
      %s76 = sphi 0, %s75
      %s92 = sphi 0, %s76
      %s98 = sphi 0, %s100
      %s101 = sphi 0, %s98
      %s102 = sphi 0, %s101
      %s118 = sphi 0, %s102
      %s122 = sphi 0, %s122
      %s124 = sphi 0, %s122
      %s125 = sphi 0, %s124
      %s139 = sphi 0, %s125
      %s143 = sphi 0, %s143
      %s145 = sphi 0, %s143
      %s146 = sphi 0, %s145
      %s160 = sphi 0, %s146
      %s164 = sphi 0, %s164
      %s166 = sphi 0, %s164
      %s167 = sphi 0, %s166
      %s181 = sphi 0, %s167
      %s185 = sphi 0, %s185
      %s187 = sphi 0, %s185
      %s188 = sphi 0, %s187
      %s202 = sphi 0, %s188
      %s206 = sphi 0, %s206
      %s208 = sphi 0, %s206
      %s209 = sphi 0, %s208
      %s223 = sphi 0, %s209
      %s227 = sphi 0, %s227
      %s229 = sphi 0, %s227
      %s230 = sphi 0, %s229
      %s244 = sphi 0, %s230
      %s248 = sphi 0, %s248
      %s250 = sphi 0, %s248
      %s251 = sphi 0, %s250
      %s265 = sphi 0, %s251
      %s269 = sphi 0, %s269
      %s271 = sphi 0, %s269
      %s272 = sphi 0, %s271
      %s286 = sphi 0, %s272
      %s290 = sphi 0, %s290
      %s292 = sphi 0, %s290
      %s293 = sphi 0, %s292
      %s307 = sphi 0, %s293
      %s311 = sphi 0, %s311
      %s313 = sphi 0, %s311
      %s314 = sphi 0, %s313
      %s328 = sphi 0, %s314
      %s332 = sphi 0, %s332
      %s334 = sphi 0, %s332
      %s335 = sphi 0, %s334
      %s349 = sphi 0, %s335
      %s353 = sphi 0, %s353
      %s355 = sphi 0, %s353
      %s356 = sphi 0, %s355
      %s370 = sphi 0, %s356
      %s374 = sphi 0, %s374
      %s376 = sphi 0, %s374
      %s377 = sphi 0, %s376
      %s391 = sphi 0, %s377
      %s395 = sphi 0, %s395
      %s397 = sphi 0, %s395
      %s398 = sphi 0, %s397
      %s412 = sphi 0, %s398
      %s418 = sphi 0, %s420
      %s421 = sphi 0, %s418
      %s422 = sphi 0, %s421
      %s438 = sphi 0, %s422
    $region4: #{tpu_custom_call.1} parent=1 // loop_header_branch
      %39 = sbr.rel (%p37) target = $region8
    $region5: #{tpu_custom_call.1} parent=1 // loop_body
      %s41 = ssub.s32 %s36, 1
      %s42 = ssub.s32 %s36, 2
      %s43 = sadd.s32 %s36, 1
      %s44 = ssub.s32 %s36, %s43
      %p45 = scmp.eq.s32.totalorder %s44, 0
      %s47 = sadd.s32 %s46, 1
      %s48 = scalar_select %p45, %s46, %s47
      %p51 = pneg %p45
      %p52 = scmp.eq.s32.totalorder %s36, 1
      %p53 = por %p51, %p52
      %p54 = scmp.ne.s32.totalorder %s46, %s49
      %p55 = scmp.eq.s32.totalorder %s36, 0
      %p56 = por %p54, %p55
      %p57 = scmp.ne.s32.totalorder %s46, %s49
      %p58 = scmp.eq.s32.totalorder %s41, 1
      %p59 = por %p57, %p58
      %p60 = scmp.ne.s32.totalorder %s49, %s50
      %p61 = scmp.eq.s32.totalorder %s41, 0
      %p62 = por %p60, %p61
      %p63 = scmp.ne.s32.totalorder %s49, %s50
      %p64 = scmp.eq.s32.totalorder %s42, 1
      %p65 = por %p63, %p64
      %p67 = scmp.ne.s32.totalorder %s50, %s66
      %p68 = scmp.eq.s32.totalorder %s42, 0
      %p69 = por %p67, %p68
      %s70 = ssub.s32 %s36, %s43
      %p71 = scmp.eq.s32.totalorder %s70, 0
      %s73 = sadd.s32 %s72, 1
      %s74 = scalar_select %p71, %s72, %s73
      %p77 = pneg %p71
      %p78 = scmp.eq.s32.totalorder %s36, 1
      %p79 = por %p77, %p78
      %p80 = scmp.ne.s32.totalorder %s72, %s75
      %p81 = scmp.eq.s32.totalorder %s36, 0
      %p82 = por %p80, %p81
      %p83 = scmp.ne.s32.totalorder %s72, %s75
      %p84 = scmp.eq.s32.totalorder %s41, 1
      %p85 = por %p83, %p84
      %p86 = scmp.ne.s32.totalorder %s75, %s76
      %p87 = scmp.eq.s32.totalorder %s41, 0
      %p88 = por %p86, %p87
      %p89 = scmp.ne.s32.totalorder %s75, %s76
      %p90 = scmp.eq.s32.totalorder %s42, 1
      %p91 = por %p89, %p90
      %p93 = scmp.ne.s32.totalorder %s76, %s92
      %p94 = scmp.eq.s32.totalorder %s42, 0
      %p95 = por %p93, %p94
      %s96 = ssub.s32 %s36, %s43
      %p97 = scmp.eq.s32.totalorder %s96, 0
      %s99 = sadd.s32 %s98, 1
      %s100 = scalar_select %p97, %s98, %s99
      %p103 = pneg %p97
      %p104 = scmp.eq.s32.totalorder %s36, 1
      %p105 = por %p103, %p104
      %p106 = scmp.ne.s32.totalorder %s98, %s101
      %p107 = scmp.eq.s32.totalorder %s36, 0
      %p108 = por %p106, %p107
      %p109 = scmp.ne.s32.totalorder %s98, %s101
      %p110 = scmp.eq.s32.totalorder %s41, 1
      %p111 = por %p109, %p110
      %p112 = scmp.ne.s32.totalorder %s101, %s102
      %p113 = scmp.eq.s32.totalorder %s41, 0
      %p114 = por %p112, %p113
      %p115 = scmp.ne.s32.totalorder %s101, %s102
      %p116 = scmp.eq.s32.totalorder %s42, 1
      %p117 = por %p115, %p116
      %p119 = scmp.ne.s32.totalorder %s102, %s118
      %p120 = scmp.eq.s32.totalorder %s42, 0
      %p121 = por %p119, %p120
      %s123 = sadd.s32 %s122, 1
      %p126 = scmp.eq.s32.totalorder %s36, 1
      %p127 = scmp.ne.s32.totalorder %s122, %s124
      %p128 = scmp.eq.s32.totalorder %s36, 0
      %p129 = por %p127, %p128
      %p130 = scmp.ne.s32.totalorder %s122, %s124
      %p131 = scmp.eq.s32.totalorder %s41, 1
      %p132 = por %p130, %p131
      %p133 = scmp.ne.s32.totalorder %s124, %s125
      %p134 = scmp.eq.s32.totalorder %s41, 0
      %p135 = por %p133, %p134
      %p136 = scmp.ne.s32.totalorder %s124, %s125
      %p137 = scmp.eq.s32.totalorder %s42, 1
      %p138 = por %p136, %p137
      %p140 = scmp.ne.s32.totalorder %s125, %s139
      %p141 = scmp.eq.s32.totalorder %s42, 0
      %p142 = por %p140, %p141
      %s144 = sadd.s32 %s143, 1
      %p147 = scmp.eq.s32.totalorder %s36, 1
      %p148 = scmp.ne.s32.totalorder %s143, %s145
      %p149 = scmp.eq.s32.totalorder %s36, 0
      %p150 = por %p148, %p149
      %p151 = scmp.ne.s32.totalorder %s143, %s145
      %p152 = scmp.eq.s32.totalorder %s41, 1
      %p153 = por %p151, %p152
      %p154 = scmp.ne.s32.totalorder %s145, %s146
      %p155 = scmp.eq.s32.totalorder %s41, 0
      %p156 = por %p154, %p155
      %p157 = scmp.ne.s32.totalorder %s145, %s146
      %p158 = scmp.eq.s32.totalorder %s42, 1
      %p159 = por %p157, %p158
      %p161 = scmp.ne.s32.totalorder %s146, %s160
      %p162 = scmp.eq.s32.totalorder %s42, 0
      %p163 = por %p161, %p162
      %s165 = sadd.s32 %s164, 1
      %p168 = scmp.eq.s32.totalorder %s36, 1
      %p169 = scmp.ne.s32.totalorder %s164, %s166
      %p170 = scmp.eq.s32.totalorder %s36, 0
      %p171 = por %p169, %p170
      %p172 = scmp.ne.s32.totalorder %s164, %s166
      %p173 = scmp.eq.s32.totalorder %s41, 1
      %p174 = por %p172, %p173
      %p175 = scmp.ne.s32.totalorder %s166, %s167
      %p176 = scmp.eq.s32.totalorder %s41, 0
      %p177 = por %p175, %p176
      %p178 = scmp.ne.s32.totalorder %s166, %s167
      %p179 = scmp.eq.s32.totalorder %s42, 1
      %p180 = por %p178, %p179
      %p182 = scmp.ne.s32.totalorder %s167, %s181
      %p183 = scmp.eq.s32.totalorder %s42, 0
      %p184 = por %p182, %p183
      %s186 = sadd.s32 %s185, 1
      %p189 = scmp.eq.s32.totalorder %s36, 1
      %p190 = scmp.ne.s32.totalorder %s185, %s187
      %p191 = scmp.eq.s32.totalorder %s36, 0
      %p192 = por %p190, %p191
      %p193 = scmp.ne.s32.totalorder %s185, %s187
      %p194 = scmp.eq.s32.totalorder %s41, 1
      %p195 = por %p193, %p194
      %p196 = scmp.ne.s32.totalorder %s187, %s188
      %p197 = scmp.eq.s32.totalorder %s41, 0
      %p198 = por %p196, %p197
      %p199 = scmp.ne.s32.totalorder %s187, %s188
      %p200 = scmp.eq.s32.totalorder %s42, 1
      %p201 = por %p199, %p200
      %p203 = scmp.ne.s32.totalorder %s188, %s202
      %p204 = scmp.eq.s32.totalorder %s42, 0
      %p205 = por %p203, %p204
      %s207 = sadd.s32 %s206, 1
      %p210 = scmp.eq.s32.totalorder %s36, 1
      %p211 = scmp.ne.s32.totalorder %s206, %s208
      %p212 = scmp.eq.s32.totalorder %s36, 0
      %p213 = por %p211, %p212
      %p214 = scmp.ne.s32.totalorder %s206, %s208
      %p215 = scmp.eq.s32.totalorder %s41, 1
      %p216 = por %p214, %p215
      %p217 = scmp.ne.s32.totalorder %s208, %s209
      %p218 = scmp.eq.s32.totalorder %s41, 0
      %p219 = por %p217, %p218
      %p220 = scmp.ne.s32.totalorder %s208, %s209
      %p221 = scmp.eq.s32.totalorder %s42, 1
      %p222 = por %p220, %p221
      %p224 = scmp.ne.s32.totalorder %s209, %s223
      %p225 = scmp.eq.s32.totalorder %s42, 0
      %p226 = por %p224, %p225
      %s228 = sadd.s32 %s227, 1
      %p231 = scmp.eq.s32.totalorder %s36, 1
      %p232 = scmp.ne.s32.totalorder %s227, %s229
      %p233 = scmp.eq.s32.totalorder %s36, 0
      %p234 = por %p232, %p233
      %p235 = scmp.ne.s32.totalorder %s227, %s229
      %p236 = scmp.eq.s32.totalorder %s41, 1
      %p237 = por %p235, %p236
      %p238 = scmp.ne.s32.totalorder %s229, %s230
      %p239 = scmp.eq.s32.totalorder %s41, 0
      %p240 = por %p238, %p239
      %p241 = scmp.ne.s32.totalorder %s229, %s230
      %p242 = scmp.eq.s32.totalorder %s42, 1
      %p243 = por %p241, %p242
      %p245 = scmp.ne.s32.totalorder %s230, %s244
      %p246 = scmp.eq.s32.totalorder %s42, 0
      %p247 = por %p245, %p246
      %s249 = sadd.s32 %s248, 1
      %p252 = scmp.eq.s32.totalorder %s36, 1
      %p253 = scmp.ne.s32.totalorder %s248, %s250
      %p254 = scmp.eq.s32.totalorder %s36, 0
      %p255 = por %p253, %p254
      %p256 = scmp.ne.s32.totalorder %s248, %s250
      %p257 = scmp.eq.s32.totalorder %s41, 1
      %p258 = por %p256, %p257
      %p259 = scmp.ne.s32.totalorder %s250, %s251
      %p260 = scmp.eq.s32.totalorder %s41, 0
      %p261 = por %p259, %p260
      %p262 = scmp.ne.s32.totalorder %s250, %s251
      %p263 = scmp.eq.s32.totalorder %s42, 1
      %p264 = por %p262, %p263
      %p266 = scmp.ne.s32.totalorder %s251, %s265
      %p267 = scmp.eq.s32.totalorder %s42, 0
      %p268 = por %p266, %p267
      %s270 = sadd.s32 %s269, 1
      %p273 = scmp.eq.s32.totalorder %s36, 1
      %p274 = scmp.ne.s32.totalorder %s269, %s271
      %p275 = scmp.eq.s32.totalorder %s36, 0
      %p276 = por %p274, %p275
      %p277 = scmp.ne.s32.totalorder %s269, %s271
      %p278 = scmp.eq.s32.totalorder %s41, 1
      %p279 = por %p277, %p278
      %p280 = scmp.ne.s32.totalorder %s271, %s272
      %p281 = scmp.eq.s32.totalorder %s41, 0
      %p282 = por %p280, %p281
      %p283 = scmp.ne.s32.totalorder %s271, %s272
      %p284 = scmp.eq.s32.totalorder %s42, 1
      %p285 = por %p283, %p284
      %p287 = scmp.ne.s32.totalorder %s272, %s286
      %p288 = scmp.eq.s32.totalorder %s42, 0
      %p289 = por %p287, %p288
      %s291 = sadd.s32 %s290, 1
      %p294 = scmp.eq.s32.totalorder %s36, 1
      %p295 = scmp.ne.s32.totalorder %s290, %s292
      %p296 = scmp.eq.s32.totalorder %s36, 0
      %p297 = por %p295, %p296
      %p298 = scmp.ne.s32.totalorder %s290, %s292
      %p299 = scmp.eq.s32.totalorder %s41, 1
      %p300 = por %p298, %p299
      %p301 = scmp.ne.s32.totalorder %s292, %s293
      %p302 = scmp.eq.s32.totalorder %s41, 0
      %p303 = por %p301, %p302
      %p304 = scmp.ne.s32.totalorder %s292, %s293
      %p305 = scmp.eq.s32.totalorder %s42, 1
      %p306 = por %p304, %p305
      %p308 = scmp.ne.s32.totalorder %s293, %s307
      %p309 = scmp.eq.s32.totalorder %s42, 0
      %p310 = por %p308, %p309
      %s312 = sadd.s32 %s311, 1
      %p315 = scmp.eq.s32.totalorder %s36, 1
      %p316 = scmp.ne.s32.totalorder %s311, %s313
      %p317 = scmp.eq.s32.totalorder %s36, 0
      %p318 = por %p316, %p317
      %p319 = scmp.ne.s32.totalorder %s311, %s313
      %p320 = scmp.eq.s32.totalorder %s41, 1
      %p321 = por %p319, %p320
      %p322 = scmp.ne.s32.totalorder %s313, %s314
      %p323 = scmp.eq.s32.totalorder %s41, 0
      %p324 = por %p322, %p323
      %p325 = scmp.ne.s32.totalorder %s313, %s314
      %p326 = scmp.eq.s32.totalorder %s42, 1
      %p327 = por %p325, %p326
      %p329 = scmp.ne.s32.totalorder %s314, %s328
      %p330 = scmp.eq.s32.totalorder %s42, 0
      %p331 = por %p329, %p330
      %s333 = sadd.s32 %s332, 1
      %p336 = scmp.eq.s32.totalorder %s36, 1
      %p337 = scmp.ne.s32.totalorder %s332, %s334
      %p338 = scmp.eq.s32.totalorder %s36, 0
      %p339 = por %p337, %p338
      %p340 = scmp.ne.s32.totalorder %s332, %s334
      %p341 = scmp.eq.s32.totalorder %s41, 1
      %p342 = por %p340, %p341
      %p343 = scmp.ne.s32.totalorder %s334, %s335
      %p344 = scmp.eq.s32.totalorder %s41, 0
      %p345 = por %p343, %p344
      %p346 = scmp.ne.s32.totalorder %s334, %s335
      %p347 = scmp.eq.s32.totalorder %s42, 1
      %p348 = por %p346, %p347
      %p350 = scmp.ne.s32.totalorder %s335, %s349
      %p351 = scmp.eq.s32.totalorder %s42, 0
      %p352 = por %p350, %p351
      %s354 = sadd.s32 %s353, 1
      %p357 = scmp.eq.s32.totalorder %s36, 1
      %p358 = scmp.ne.s32.totalorder %s353, %s355
      %p359 = scmp.eq.s32.totalorder %s36, 0
      %p360 = por %p358, %p359
      %p361 = scmp.ne.s32.totalorder %s353, %s355
      %p362 = scmp.eq.s32.totalorder %s41, 1
      %p363 = por %p361, %p362
      %p364 = scmp.ne.s32.totalorder %s355, %s356
      %p365 = scmp.eq.s32.totalorder %s41, 0
      %p366 = por %p364, %p365
      %p367 = scmp.ne.s32.totalorder %s355, %s356
      %p368 = scmp.eq.s32.totalorder %s42, 1
      %p369 = por %p367, %p368
      %p371 = scmp.ne.s32.totalorder %s356, %s370
      %p372 = scmp.eq.s32.totalorder %s42, 0
      %p373 = por %p371, %p372
      %s375 = sadd.s32 %s374, 1
      %p378 = scmp.eq.s32.totalorder %s36, 1
      %p379 = scmp.ne.s32.totalorder %s374, %s376
      %p380 = scmp.eq.s32.totalorder %s36, 0
      %p381 = por %p379, %p380
      %p382 = scmp.ne.s32.totalorder %s374, %s376
      %p383 = scmp.eq.s32.totalorder %s41, 1
      %p384 = por %p382, %p383
      %p385 = scmp.ne.s32.totalorder %s376, %s377
      %p386 = scmp.eq.s32.totalorder %s41, 0
      %p387 = por %p385, %p386
      %p388 = scmp.ne.s32.totalorder %s376, %s377
      %p389 = scmp.eq.s32.totalorder %s42, 1
      %p390 = por %p388, %p389
      %p392 = scmp.ne.s32.totalorder %s377, %s391
      %p393 = scmp.eq.s32.totalorder %s42, 0
      %p394 = por %p392, %p393
      %s396 = sadd.s32 %s395, 1
      %p399 = scmp.eq.s32.totalorder %s36, 1
      %p400 = scmp.ne.s32.totalorder %s395, %s397
      %p401 = scmp.eq.s32.totalorder %s36, 0
      %p402 = por %p400, %p401
      %p403 = scmp.ne.s32.totalorder %s395, %s397
      %p404 = scmp.eq.s32.totalorder %s41, 1
      %p405 = por %p403, %p404
      %p406 = scmp.ne.s32.totalorder %s397, %s398
      %p407 = scmp.eq.s32.totalorder %s41, 0
      %p408 = por %p406, %p407
      %p409 = scmp.ne.s32.totalorder %s397, %s398
      %p410 = scmp.eq.s32.totalorder %s42, 1
      %p411 = por %p409, %p410
      %p413 = scmp.ne.s32.totalorder %s398, %s412
      %p414 = scmp.eq.s32.totalorder %s42, 0
      %p415 = por %p413, %p414
      %s416 = ssub.s32 %s36, %s43
      %p417 = scmp.eq.s32.totalorder %s416, 0
      %s419 = sadd.s32 %s418, 1
      %s420 = scalar_select %p417, %s418, %s419
      %p423 = pneg %p417
      %p424 = scmp.eq.s32.totalorder %s36, 1
      %p425 = por %p423, %p424
      %p426 = scmp.ne.s32.totalorder %s418, %s421
      %p427 = scmp.eq.s32.totalorder %s36, 0
      %p428 = por %p426, %p427
      %p429 = scmp.ne.s32.totalorder %s418, %s421
      %p430 = scmp.eq.s32.totalorder %s41, 1
      %p431 = por %p429, %p430
      %p432 = scmp.ne.s32.totalorder %s421, %s422
      %p433 = scmp.eq.s32.totalorder %s41, 0
      %p434 = por %p432, %p433
      %p435 = scmp.ne.s32.totalorder %s421, %s422
      %p436 = scmp.eq.s32.totalorder %s42, 1
      %p437 = por %p435, %p436
      %p439 = scmp.ne.s32.totalorder %s422, %s438
      %p440 = scmp.eq.s32.totalorder %s42, 0
      %p441 = por %p439, %p440
      %p442 = scmp.le.s32.totalorder 1, %s36
      %p443 = scmp.lt.s32.totalorder %s36, 3
      %p444 = pnand %p442, %p443
      %p445 = pneg %p444
      // Predicated region
      $region9: #{tpu_custom_call.1} parent=5 // pred_check
        _
      $region10: #{tpu_custom_call.1} parent=5 // pred_check_branch
        %447 = sbr.rel (%p444) target = $region12
      $region11: #{tpu_custom_call.1} parent=5 // pred_region
        %s448 = ssub.s32 %s36, 1
        // Predicated region
        $region13: #{tpu_custom_call.1} parent=11 // pred_check
          %p449 = pneg %p135
        $region14: #{tpu_custom_call.1} parent=11 // pred_check_branch
          %451 = sbr.rel (%p449) target = $region16
        $region15: #{tpu_custom_call.1} parent=11 // pred_region
          _
        $region16: #{tpu_custom_call.1} parent=11 // pred_fallthru
          _
        // Predicated region
        $region17: #{tpu_custom_call.1} parent=11 // pred_check
          %p452 = pneg %p156
        $region18: #{tpu_custom_call.1} parent=11 // pred_check_branch
          %454 = sbr.rel (%p452) target = $region20
        $region19: #{tpu_custom_call.1} parent=11 // pred_region
          _
        $region20: #{tpu_custom_call.1} parent=11 // pred_fallthru
          _
        // Predicated region
        $region21: #{tpu_custom_call.1} parent=11 // pred_check
          %p455 = pneg %p177
        $region22: #{tpu_custom_call.1} parent=11 // pred_check_branch
          %457 = sbr.rel (%p455) target = $region24
        $region23: #{tpu_custom_call.1} parent=11 // pred_region
          _
        $region24: #{tpu_custom_call.1} parent=11 // pred_fallthru
          _
        // Predicated region
        $region25: #{tpu_custom_call.1} parent=11 // pred_check
          %p458 = pneg %p198
        $region26: #{tpu_custom_call.1} parent=11 // pred_check_branch
          %460 = sbr.rel (%p458) target = $region28
        $region27: #{tpu_custom_call.1} parent=11 // pred_region
          _
        $region28: #{tpu_custom_call.1} parent=11 // pred_fallthru
          _
        // Predicated region
        $region29: #{tpu_custom_call.1} parent=11 // pred_check
          %p461 = pneg %p219
        $region30: #{tpu_custom_call.1} parent=11 // pred_check_branch
          %463 = sbr.rel (%p461) target = $region32
        $region31: #{tpu_custom_call.1} parent=11 // pred_region
          %465 = vsyncadd [#allocation9], 0
          %s466 = sshll.u32 %s7, 4
          %s467 = int_to_ptr.hbm [resolvable:$true] %s466
          %s468 = sshll.u32 [#allocation8], 4
          %s469 = int_to_ptr.vmem [resolvable:$true] %s468
          %474 = dma.hbm_to_vmem [thread:$0]  %s467, 512, %s469, [#allocation9], 128, 128, 8
        $region32: #{tpu_custom_call.1} parent=11 // pred_fallthru
          _
        // Predicated region
        $region33: #{tpu_custom_call.1} parent=11 // pred_check
          %p475 = pneg %p240
        $region34: #{tpu_custom_call.1} parent=11 // pred_check_branch
          %477 = sbr.rel (%p475) target = $region36
        $region35: #{tpu_custom_call.1} parent=11 // pred_region
          %479 = vsyncadd [#allocation9], 0
          %s481 = sshll.u32 %s8, 4
          %s482 = int_to_ptr.hbm [resolvable:$true] %s481
          %s483 = sshll.u32 [#allocation10], 4
          %s484 = int_to_ptr.vmem [resolvable:$true] %s483
          %486 = dma.hbm_to_vmem [thread:$0]  %s482, 16, %s484, [#allocation9]
        $region36: #{tpu_custom_call.1} parent=11 // pred_fallthru
          _
        // Predicated region
        $region37: #{tpu_custom_call.1} parent=11 // pred_check
          %p487 = pneg %p261
        $region38: #{tpu_custom_call.1} parent=11 // pred_check_branch
          %489 = sbr.rel (%p487) target = $region40
        $region39: #{tpu_custom_call.1} parent=11 // pred_region
          %491 = vsyncadd [#allocation12], 0
          %s492 = sshll.u32 %s9, 4
          %s493 = int_to_ptr.hbm [resolvable:$true] %s492
          %s494 = sshll.u32 [#allocation11], 4
          %s495 = int_to_ptr.vmem [resolvable:$true] %s494
          %500 = dma.hbm_to_vmem [thread:$0]  %s493, 512, %s495, [#allocation12], 128, 128, 8
        $region40: #{tpu_custom_call.1} parent=11 // pred_fallthru
          _
        // Predicated region
        $region41: #{tpu_custom_call.1} parent=11 // pred_check
          %p501 = pneg %p282
        $region42: #{tpu_custom_call.1} parent=11 // pred_check_branch
          %503 = sbr.rel (%p501) target = $region44
        $region43: #{tpu_custom_call.1} parent=11 // pred_region
          %505 = vsyncadd [#allocation12], 0
          %s507 = sshll.u32 %s10, 4
          %s508 = int_to_ptr.hbm [resolvable:$true] %s507
          %s509 = sshll.u32 [#allocation13], 4
          %s510 = int_to_ptr.vmem [resolvable:$true] %s509
          %512 = dma.hbm_to_vmem [thread:$0]  %s508, 16, %s510, [#allocation12]
        $region44: #{tpu_custom_call.1} parent=11 // pred_fallthru
          _
        // Predicated region
        $region45: #{tpu_custom_call.1} parent=11 // pred_check
          %p513 = pneg %p303
        $region46: #{tpu_custom_call.1} parent=11 // pred_check_branch
          %515 = sbr.rel (%p513) target = $region48
        $region47: #{tpu_custom_call.1} parent=11 // pred_region
          _
        $region48: #{tpu_custom_call.1} parent=11 // pred_fallthru
          _
        // Predicated region
        $region49: #{tpu_custom_call.1} parent=11 // pred_check
          %p516 = pneg %p324
        $region50: #{tpu_custom_call.1} parent=11 // pred_check_branch
          %518 = sbr.rel (%p516) target = $region52
        $region51: #{tpu_custom_call.1} parent=11 // pred_region
          _
        $region52: #{tpu_custom_call.1} parent=11 // pred_fallthru
          _
        // Predicated region
        $region53: #{tpu_custom_call.1} parent=11 // pred_check
          %p519 = pneg %p345
        $region54: #{tpu_custom_call.1} parent=11 // pred_check_branch
          %521 = sbr.rel (%p519) target = $region56
        $region55: #{tpu_custom_call.1} parent=11 // pred_region
          %523 = vsyncadd [#allocation15], 0
          %s524 = sshll.u32 %s13, 4
          %s525 = int_to_ptr.hbm [resolvable:$true] %s524
          %s526 = sshll.u32 [#allocation14], 4
          %s527 = int_to_ptr.vmem [resolvable:$true] %s526
          %532 = dma.hbm_to_vmem [thread:$0]  %s525, 512, %s527, [#allocation15], 128, 128, 8
        $region56: #{tpu_custom_call.1} parent=11 // pred_fallthru
          _
        // Predicated region
        $region57: #{tpu_custom_call.1} parent=11 // pred_check
          %p533 = pneg %p366
        $region58: #{tpu_custom_call.1} parent=11 // pred_check_branch
          %535 = sbr.rel (%p533) target = $region60
        $region59: #{tpu_custom_call.1} parent=11 // pred_region
          _
        $region60: #{tpu_custom_call.1} parent=11 // pred_fallthru
          _
        // Predicated region
        $region61: #{tpu_custom_call.1} parent=11 // pred_check
          %p536 = pneg %p387
        $region62: #{tpu_custom_call.1} parent=11 // pred_check_branch
          %538 = sbr.rel (%p536) target = $region64
        $region63: #{tpu_custom_call.1} parent=11 // pred_region
          %540 = vsyncadd [#allocation15], 0
          %s542 = sshll.u32 %s15, 4
          %s543 = int_to_ptr.hbm [resolvable:$true] %s542
          %s544 = sshll.u32 [#allocation16], 4
          %s545 = int_to_ptr.vmem [resolvable:$true] %s544
          %547 = dma.hbm_to_vmem [thread:$0]  %s543, 128, %s545, [#allocation15]
        $region64: #{tpu_custom_call.1} parent=11 // pred_fallthru
          _
        // Predicated region
        $region65: #{tpu_custom_call.1} parent=11 // pred_check
          %p548 = pneg %p408
        $region66: #{tpu_custom_call.1} parent=11 // pred_check_branch
          %550 = sbr.rel (%p548) target = $region68
        $region67: #{tpu_custom_call.1} parent=11 // pred_region
          %552 = vsyncadd [#allocation18], 0
          %s553 = sshll.u32 %s16, 4
          %s554 = int_to_ptr.hbm [resolvable:$true] %s553
          %s555 = sshll.u32 [#allocation17], 4
          %s556 = int_to_ptr.vmem [resolvable:$true] %s555
          %561 = dma.hbm_to_vmem [thread:$0]  %s554, 512, %s556, [#allocation18], 128, 128, 8
        $region68: #{tpu_custom_call.1} parent=11 // pred_fallthru
          _
      $region12: #{tpu_custom_call.1} parent=5 // pred_fallthru
        _
      %p562 = scmp.lt.s32.totalorder %s36, 2
      // Predicated region
      $region69: #{tpu_custom_call.1} parent=5 // pred_check
        %p563 = pneg %p562
      $region70: #{tpu_custom_call.1} parent=5 // pred_check_branch
        %565 = sbr.rel (%p563) target = $region72
      $region71: #{tpu_custom_call.1} parent=5 // pred_region
        // Predicated region
        $region73: #{tpu_custom_call.1} parent=71 // pred_check
          %p566 = pneg %p56
        $region74: #{tpu_custom_call.1} parent=71 // pred_check_branch
          %568 = sbr.rel (%p566) target = $region76
        $region75: #{tpu_custom_call.1} parent=71 // pred_region
          %s569 = sand.u32 %s46, 1
          %s570 = scalar_lea.sflag [#allocation3], %s569
          %s571 = sand.u32 %s46, 1
          %s572 = smul.addr %s571, 8
          %s573 = scalar_lea.vmem [#allocation2], %s572
          %575 = vsyncadd %s570, 0
          %s576 = smul.addr %s36, 8
          %s577 = scalar_lea.hbm %s0, %s576
          %s579 = sshll.u32 %s577, 4
          %s580 = int_to_ptr.hbm [resolvable:$true] %s579
          %s581 = sshll.u32 %s573, 4
          %s582 = int_to_ptr.vmem [resolvable:$true] %s581
          %584 = dma.hbm_to_vmem [thread:$0]  %s580, 128, %s582, %s570
        $region76: #{tpu_custom_call.1} parent=71 // pred_fallthru
          _
        // Predicated region
        $region77: #{tpu_custom_call.1} parent=71 // pred_check
          %p585 = pneg %p82
        $region78: #{tpu_custom_call.1} parent=71 // pred_check_branch
          %587 = sbr.rel (%p585) target = $region80
        $region79: #{tpu_custom_call.1} parent=71 // pred_region
          %s588 = sand.u32 %s36, 1
          %s589 = scalar_lea.sflag [#allocation6], %s588
          %s590 = sand.u32 %s72, 1
          %s591 = smul.addr %s590, 8
          %s592 = scalar_lea.vmem [#allocation5], %s591
          %594 = vsyncadd %s589, 0
          %s595 = smul.addr %s36, 8
          %s596 = scalar_lea.hbm %s1, %s595
          %s598 = sshll.u32 %s596, 4
          %s599 = int_to_ptr.hbm [resolvable:$true] %s598
          %s600 = sshll.u32 %s592, 4
          %s601 = int_to_ptr.vmem [resolvable:$true] %s600
          %603 = dma.hbm_to_vmem [thread:$0]  %s599, 128, %s601, %s589
        $region80: #{tpu_custom_call.1} parent=71 // pred_fallthru
          _
        // Predicated region
        $region81: #{tpu_custom_call.1} parent=71 // pred_check
          %p604 = pneg %p108
        $region82: #{tpu_custom_call.1} parent=71 // pred_check_branch
          %606 = sbr.rel (%p604) target = $region84
        $region83: #{tpu_custom_call.1} parent=71 // pred_region
          %s607 = sand.u32 %s36, 1
          %s608 = scalar_lea.sflag [#allocation6], %s607
          %s609 = sand.u32 %s98, 1
          %s610 = smul.addr %s609, 8
          %s611 = scalar_lea.vmem [#allocation7], %s610
          %613 = vsyncadd %s608, 0
          %s614 = smul.addr %s36, 8
          %s615 = scalar_lea.hbm %s2, %s614
          %s617 = sshll.u32 %s615, 4
          %s618 = int_to_ptr.hbm [resolvable:$true] %s617
          %s619 = sshll.u32 %s611, 4
          %s620 = int_to_ptr.vmem [resolvable:$true] %s619
          %622 = dma.hbm_to_vmem [thread:$0]  %s618, 128, %s620, %s608
        $region84: #{tpu_custom_call.1} parent=71 // pred_fallthru
          _
      $region72: #{tpu_custom_call.1} parent=5 // pred_fallthru
        _
      %p623 = scmp.le.s32.totalorder 1, %s36
      %p624 = scmp.lt.s32.totalorder %s36, 3
      %p625 = pnand %p623, %p624
      %p626 = pneg %p625
      // Predicated region
      $region85: #{tpu_custom_call.1} parent=5 // pred_check
        _
      $region86: #{tpu_custom_call.1} parent=5 // pred_check_branch
        %628 = sbr.rel (%p625) target = $region88
      $region87: #{tpu_custom_call.1} parent=5 // pred_region
        %s629 = ssub.s32 %s36, 1
        %s630 = sand.u32 %s49, 1
        %s631 = scalar_lea.sflag [#allocation3], %s630
        %s632 = sand.u32 %s49, 1
        %s633 = smul.addr %s632, 8
        %s634 = scalar_lea.vmem [#allocation2], %s633
        // Predicated region
        $region89: #{tpu_custom_call.1} parent=87 // pred_check
          %p635 = pneg %p62
        $region90: #{tpu_custom_call.1} parent=87 // pred_check_branch
          %637 = sbr.rel (%p635) target = $region92
        $region91: #{tpu_custom_call.1} parent=87 // pred_region
          %639 = dma.done %s631, 128
        $region92: #{tpu_custom_call.1} parent=87 // pred_fallthru
          _
        %s640 = sand.u32 %s41, 1
        %s641 = scalar_lea.sflag [#allocation6], %s640
        %s642 = sand.u32 %s75, 1
        %s643 = smul.addr %s642, 8
        %s644 = scalar_lea.vmem [#allocation5], %s643
        // Predicated region
        $region93: #{tpu_custom_call.1} parent=87 // pred_check
          %p645 = pneg %p88
        $region94: #{tpu_custom_call.1} parent=87 // pred_check_branch
          %647 = sbr.rel (%p645) target = $region96
        $region95: #{tpu_custom_call.1} parent=87 // pred_region
          %649 = dma.done %s641, 128
        $region96: #{tpu_custom_call.1} parent=87 // pred_fallthru
          _
        %s650 = sand.u32 %s41, 1
        %s651 = scalar_lea.sflag [#allocation6], %s650
        %s652 = sand.u32 %s101, 1
        %s653 = smul.addr %s652, 8
        %s654 = scalar_lea.vmem [#allocation7], %s653
        // Predicated region
        $region97: #{tpu_custom_call.1} parent=87 // pred_check
          %p655 = pneg %p114
        $region98: #{tpu_custom_call.1} parent=87 // pred_check_branch
          %657 = sbr.rel (%p655) target = $region100
        $region99: #{tpu_custom_call.1} parent=87 // pred_region
          %659 = dma.done %s651, 128
        $region100: #{tpu_custom_call.1} parent=87 // pred_fallthru
          _
        // Predicated region
        $region101: #{tpu_custom_call.1} parent=87 // pred_check
          %p660 = pneg %p219
        $region102: #{tpu_custom_call.1} parent=87 // pred_check_branch
          %662 = sbr.rel (%p660) target = $region104
        $region103: #{tpu_custom_call.1} parent=87 // pred_region
          %664 = dma.done [#allocation9], 512
        $region104: #{tpu_custom_call.1} parent=87 // pred_fallthru
          _
        // Predicated region
        $region105: #{tpu_custom_call.1} parent=87 // pred_check
          %p665 = pneg %p240
        $region106: #{tpu_custom_call.1} parent=87 // pred_check_branch
          %667 = sbr.rel (%p665) target = $region108
        $region107: #{tpu_custom_call.1} parent=87 // pred_region
          %669 = dma.done [#allocation9], 16
        $region108: #{tpu_custom_call.1} parent=87 // pred_fallthru
          _
        // Predicated region
        $region109: #{tpu_custom_call.1} parent=87 // pred_check
          %p670 = pneg %p261
        $region110: #{tpu_custom_call.1} parent=87 // pred_check_branch
          %672 = sbr.rel (%p670) target = $region112
        $region111: #{tpu_custom_call.1} parent=87 // pred_region
          %674 = dma.done [#allocation12], 512
        $region112: #{tpu_custom_call.1} parent=87 // pred_fallthru
          _
        // Predicated region
        $region113: #{tpu_custom_call.1} parent=87 // pred_check
          %p675 = pneg %p282
        $region114: #{tpu_custom_call.1} parent=87 // pred_check_branch
          %677 = sbr.rel (%p675) target = $region116
        $region115: #{tpu_custom_call.1} parent=87 // pred_region
          %679 = dma.done [#allocation12], 16
        $region116: #{tpu_custom_call.1} parent=87 // pred_fallthru
          _
        // Predicated region
        $region117: #{tpu_custom_call.1} parent=87 // pred_check
          %p680 = pneg %p345
        $region118: #{tpu_custom_call.1} parent=87 // pred_check_branch
          %682 = sbr.rel (%p680) target = $region120
        $region119: #{tpu_custom_call.1} parent=87 // pred_region
          %684 = dma.done [#allocation15], 512
        $region120: #{tpu_custom_call.1} parent=87 // pred_fallthru
          _
        // Predicated region
        $region121: #{tpu_custom_call.1} parent=87 // pred_check
          %p685 = pneg %p387
        $region122: #{tpu_custom_call.1} parent=87 // pred_check_branch
          %687 = sbr.rel (%p685) target = $region124
        $region123: #{tpu_custom_call.1} parent=87 // pred_region
          %689 = dma.done [#allocation15], 128
        $region124: #{tpu_custom_call.1} parent=87 // pred_fallthru
          _
        // Predicated region
        $region125: #{tpu_custom_call.1} parent=87 // pred_check
          %p690 = pneg %p408
        $region126: #{tpu_custom_call.1} parent=87 // pred_check_branch
          %692 = sbr.rel (%p690) target = $region128
        $region127: #{tpu_custom_call.1} parent=87 // pred_region
          %694 = dma.done [#allocation18], 512
        $region128: #{tpu_custom_call.1} parent=87 // pred_fallthru
          _
        %s695 = sand.u32 %s49, 1
        %s696 = scalar_lea.sflag [#allocation3], %s695
        %s697 = sand.u32 %s49, 1
        %s698 = smul.addr %s697, 8
        %s699 = scalar_lea.vmem [#allocation2], %s698
        %p700 = pneg %p62
        %p701 = pneg %p59
        %s702 = sand.u32 %s41, 1
        %s703 = scalar_lea.sflag [#allocation6], %s702
        %s704 = sand.u32 %s75, 1
        %s705 = smul.addr %s704, 8
        %s706 = scalar_lea.vmem [#allocation5], %s705
        %p707 = pneg %p88
        %p708 = pneg %p85
        %s709 = sand.u32 %s41, 1
        %s710 = scalar_lea.sflag [#allocation6], %s709
        %s711 = sand.u32 %s101, 1
        %s712 = smul.addr %s711, 8
        %s713 = scalar_lea.vmem [#allocation7], %s712
        %p714 = pneg %p114
        %p715 = pneg %p111
        %p716 = pneg %p135
        %p717 = pneg %p132
        %p718 = pneg %p156
        %p719 = pneg %p153
        %p720 = pneg %p177
        %p721 = pneg %p174
        %p722 = pneg %p198
        %p723 = pneg %p195
        %p724 = pneg %p219
        %p725 = pneg %p216
        %p726 = pneg %p240
        %p727 = pneg %p237
        %p728 = pneg %p261
        %p729 = pneg %p258
        %p730 = pneg %p282
        %p731 = pneg %p279
        %p732 = pneg %p303
        %p733 = pneg %p300
        %p734 = pneg %p324
        %p735 = pneg %p321
        %p736 = pneg %p345
        %p737 = pneg %p342
        %p738 = pneg %p366
        %p739 = pneg %p363
        %p740 = pneg %p387
        %p741 = pneg %p384
        %p742 = pneg %p408
        %p743 = pneg %p405
        %p744 = pneg %p434
        %p745 = pneg %p431
        %s746 = sand.u32 %s421, 1
        %s747 = scalar_lea.sflag [#allocation4], %s746
        %s748 = sand.u32 %s421, 1
        %s749 = smul.addr %s748, 8
        %s750 = scalar_lea.vmem [#allocation19], %s749
        %v751 = vld [vmem:[%s634] sm:$0xff]
        %v752 = vld [vmem:[%s3] sm:$0xff]
        %v753 = vld [vmem:[%s3 + $0x8] sm:$0xff]
        %v754 = vld [vmem:[%s3 + $0x10] sm:$0xff]
        %v755 = vld [vmem:[%s3 + $0x18] sm:$0xff]
        %v756 = vld [vmem:[%s4] sm:$0x1]
        %v758 = vperm.slane %v756, 0
        %vm760 = vcmask 261120
        %v762 = vsel %vm760, %v751, 0
        %764 = vmatpush.msra.mxu0 0.0
        %765 = vmatpush.msra.mxu0 0.0
        %766 = vmatpush.msra.mxu0 0.0
        %767 = vmatpush.msra.mxu0 0.0
        %768 = vmatpush.msra.mxu0 0.0
        %769 = vmatpush.msra.mxu0 0.0
        %770 = vmatpush.msra.mxu0 0.0
        %771 = vmatpush.msra.mxu0 0.0
        %772 = vmatpush.msra.mxu0 0.0
        %773 = vmatpush.msra.mxu0 0.0
        %774 = vmatpush.msra.mxu0 0.0
        %775 = vmatpush.msra.mxu0 0.0
        %776 = vmatpush.msra.mxu0 %v755
        %777 = vmatpush.msra.mxu0 %v754
        %778 = vmatpush.msra.mxu0 %v753
        %779 = vmatpush.msra.mxu0 %v752
        %780 = vmatmul.f32.gmra.mxu0 %v762
        %v781 = vpop.f32.mrf.mxu0
        %v782 = vadd.f32 %v758, %v781
        %783 = vdwg.mxu0
        %v784 = vld [vmem:[%s644] sm:$0xff]
        %v785 = vld [vmem:[%s5] sm:$0xff]
        %v786 = vld [vmem:[%s5 + $0x8] sm:$0xff]
        %v787 = vld [vmem:[%s5 + $0x10] sm:$0xff]
        %v788 = vld [vmem:[%s5 + $0x18] sm:$0xff]
        %v789 = vld [vmem:[%s6] sm:$0x1]
        %v791 = vperm.slane %v789, 0
        %v794 = vsel %vm760, %v784, 0
        %796 = vmatpush.msra.mxu0 0.0
        %797 = vmatpush.msra.mxu0 0.0
        %798 = vmatpush.msra.mxu0 0.0
        %799 = vmatpush.msra.mxu0 0.0
        %800 = vmatpush.msra.mxu0 0.0
        %801 = vmatpush.msra.mxu0 0.0
        %802 = vmatpush.msra.mxu0 0.0
        %803 = vmatpush.msra.mxu0 0.0
        %804 = vmatpush.msra.mxu0 0.0
        %805 = vmatpush.msra.mxu0 0.0
        %806 = vmatpush.msra.mxu0 0.0
        %807 = vmatpush.msra.mxu0 0.0
        %808 = vmatpush.msra.mxu0 %v788
        %809 = vmatpush.msra.mxu0 %v787
        %810 = vmatpush.msra.mxu0 %v786
        %811 = vmatpush.msra.mxu0 %v785
        %812 = vmatmul.f32.gmra.mxu0 %v794
        %v813 = vpop.f32.mrf.mxu0
        %v814 = vadd.f32 %v791, %v813
        %815 = vdwg.mxu0
        %v816 = vld [vmem:[%s654] sm:$0xff]
        %v817 = vld [vmem:[#allocation8] sm:$0xff]
        %v818 = vld [vmem:[#allocation8 + $0x8] sm:$0xff]
        %v819 = vld [vmem:[#allocation8 + $0x10] sm:$0xff]
        %v820 = vld [vmem:[#allocation8 + $0x18] sm:$0xff]
        %v821 = vld [vmem:[#allocation10] sm:$0x1]
        %v823 = vperm.slane %v821, 0
        %v826 = vsel %vm760, %v816, 0
        %828 = vmatpush.msra.mxu0 0.0
        %829 = vmatpush.msra.mxu0 0.0
        %830 = vmatpush.msra.mxu0 0.0
        %831 = vmatpush.msra.mxu0 0.0
        %832 = vmatpush.msra.mxu0 0.0
        %833 = vmatpush.msra.mxu0 0.0
        %834 = vmatpush.msra.mxu0 0.0
        %835 = vmatpush.msra.mxu0 0.0
        %836 = vmatpush.msra.mxu0 0.0
        %837 = vmatpush.msra.mxu0 0.0
        %838 = vmatpush.msra.mxu0 0.0
        %839 = vmatpush.msra.mxu0 0.0
        %840 = vmatpush.msra.mxu0 %v820
        %841 = vmatpush.msra.mxu0 %v819
        %842 = vmatpush.msra.mxu0 %v818
        %843 = vmatpush.msra.mxu0 %v817
        %844 = vmatmul.f32.gmra.mxu0 %v826
        %v845 = vpop.f32.mrf.mxu0
        %v846 = vadd.f32 %v823, %v845
        %847 = vdwg.mxu0
        %v848 = vld [vmem:[%s11] sm:$0xff]
        %v849 = vld [vmem:[%s11 + $0x8] sm:$0xff]
        %v850 = vld [vmem:[%s11 + $0x10] sm:$0xff]
        %v851 = vld [vmem:[%s11 + $0x18] sm:$0xff]
        %v852 = vld [vmem:[#allocation14] sm:$0xff]
        %v853 = vld [vmem:[#allocation14 + $0x8] sm:$0xff]
        %v854 = vld [vmem:[#allocation14 + $0x10] sm:$0xff]
        %v855 = vld [vmem:[#allocation14 + $0x18] sm:$0xff]
        %v856 = vld [vmem:[%s14] sm:$0xff]
        %v857 = vld [vmem:[%s14 + $0x8] sm:$0xff]
        %v858 = vld [vmem:[%s14 + $0x10] sm:$0xff]
        %v859 = vld [vmem:[%s14 + $0x18] sm:$0xff]
        %vm860 = vcmask 64512
        %v862 = vsel %vm860, %v848, 0
        %v865 = vsel %vm860, %v849, 0
        %v868 = vsel %vm860, %v850, 0
        %v871 = vsel %vm860, %v851, 0
        %873 = vmatpush.msra.mxu0 0.0
        %874 = vmatpush.msra.mxu0 0.0
        %875 = vmatpush.msra.mxu0 0.0
        %876 = vmatpush.msra.mxu0 0.0
        %877 = vmatpush.msra.mxu0 0.0
        %878 = vmatpush.msra.mxu0 0.0
        %879 = vmatpush.msra.mxu0 0.0
        %880 = vmatpush.msra.mxu0 0.0
        %881 = vmatpush.msra.mxu0 0.0
        %882 = vmatpush.msra.mxu0 0.0
        %883 = vmatpush.msra.mxu0 0.0
        %884 = vmatpush.msra.mxu0 0.0
        %885 = vmatpush.msra.mxu0 0.0
        %886 = vmatpush.msra.mxu0 0.0
        %887 = vmatpush.msra.mxu0 0.0
        %888 = vmatpush.msra.mxu0 %v782
        %889 = vmatmul.f32.gmra.mxu0 %v862
        %v890 = vpop.f32.mrf.mxu0
        %v891 = vadd.f32 0.0, %v890
        %892 = vmatmul.f32.gmra.mxu0 %v865
        %v893 = vpop.f32.mrf.mxu0
        %v894 = vadd.f32 0.0, %v893
        %895 = vmatmul.f32.gmra.mxu0 %v868
        %v896 = vpop.f32.mrf.mxu0
        %v897 = vadd.f32 0.0, %v896
        %898 = vmatmul.f32.gmra.mxu0 %v871
        %v899 = vpop.f32.mrf.mxu0
        %v900 = vadd.f32 0.0, %v899
        %901 = vdwg.mxu0
        %v902 = vmul.f32 %v891, %v852
        %v903 = vmul.f32 %v894, %v853
        %v904 = vmul.f32 %v897, %v854
        %v905 = vmul.f32 %v900, %v855
        %v907 = vsel %vm760, %v902, 0
        %v910 = vsel %vm760, %v903, 0
        %v913 = vsel %vm760, %v904, 0
        %v916 = vsel %vm760, %v905, 0
        %918 = vmatpush.msra.mxu0 0.0
        %919 = vmatpush.msra.mxu0 0.0
        %920 = vmatpush.msra.mxu0 0.0
        %921 = vmatpush.msra.mxu0 0.0
        %922 = vmatpush.msra.mxu0 0.0
        %923 = vmatpush.msra.mxu0 0.0
        %924 = vmatpush.msra.mxu0 0.0
        %925 = vmatpush.msra.mxu0 0.0
        %926 = vmatpush.msra.mxu0 0.0
        %927 = vmatpush.msra.mxu0 0.0
        %928 = vmatpush.msra.mxu0 0.0
        %929 = vmatpush.msra.mxu0 0.0
        %930 = vmatpush.msra.mxu0 %v859
        %931 = vmatpush.msra.mxu0 %v858
        %932 = vmatpush.msra.mxu0 %v857
        %933 = vmatpush.msra.mxu0 %v856
        %934 = vmatmul.f32.gmra.mxu0 %v907
        %v935 = vpop.f32.mrf.mxu0
        %v936 = vadd.f32 0.0, %v935
        %937 = vmatmul.f32.gmra.mxu0 %v910
        %v938 = vpop.f32.mrf.mxu0
        %v939 = vadd.f32 0.0, %v938
        %940 = vmatmul.f32.gmra.mxu0 %v913
        %v941 = vpop.f32.mrf.mxu0
        %v942 = vadd.f32 0.0, %v941
        %943 = vmatmul.f32.gmra.mxu0 %v916
        %v944 = vpop.f32.mrf.mxu0
        %v945 = vadd.f32 0.0, %v944
        %946 = vdwg.mxu0
        %947 = vmatpush.msra.mxu0 0.0
        %948 = vmatpush.msra.mxu0 0.0
        %949 = vmatpush.msra.mxu0 0.0
        %950 = vmatpush.msra.mxu0 0.0
        %951 = vmatpush.msra.mxu0 0.0
        %952 = vmatpush.msra.mxu0 0.0
        %953 = vmatpush.msra.mxu0 0.0
        %954 = vmatpush.msra.mxu0 0.0
        %955 = vmatpush.msra.mxu0 0.0
        %956 = vmatpush.msra.mxu0 0.0
        %957 = vmatpush.msra.mxu0 0.0
        %958 = vmatpush.msra.mxu0 0.0
        %959 = vmatpush.msra.mxu0 0.0
        %960 = vmatpush.msra.mxu0 0.0
        %961 = vmatpush.msra.mxu0 0.0
        %962 = vmatpush.msra.mxu0 %v814
        %963 = vmatmul.f32.gmra.mxu0 %v862
        %v964 = vpop.f32.mrf.mxu0
        %v965 = vadd.f32 0.0, %v964
        %966 = vmatmul.f32.gmra.mxu0 %v865
        %v967 = vpop.f32.mrf.mxu0
        %v968 = vadd.f32 0.0, %v967
        %969 = vmatmul.f32.gmra.mxu0 %v868
        %v970 = vpop.f32.mrf.mxu0
        %v971 = vadd.f32 0.0, %v970
        %972 = vmatmul.f32.gmra.mxu0 %v871
        %v973 = vpop.f32.mrf.mxu0
        %v974 = vadd.f32 0.0, %v973
        %975 = vdwg.mxu0
        %v976 = vmul.f32 %v965, %v852
        %v977 = vmul.f32 %v968, %v853
        %v978 = vmul.f32 %v971, %v854
        %v979 = vmul.f32 %v974, %v855
        %v981 = vsel %vm760, %v976, 0
        %v984 = vsel %vm760, %v977, 0
        %v987 = vsel %vm760, %v978, 0
        %v990 = vsel %vm760, %v979, 0
        %992 = vmatpush.msra.mxu0 0.0
        %993 = vmatpush.msra.mxu0 0.0
        %994 = vmatpush.msra.mxu0 0.0
        %995 = vmatpush.msra.mxu0 0.0
        %996 = vmatpush.msra.mxu0 0.0
        %997 = vmatpush.msra.mxu0 0.0
        %998 = vmatpush.msra.mxu0 0.0
        %999 = vmatpush.msra.mxu0 0.0
        %1000 = vmatpush.msra.mxu0 0.0
        %1001 = vmatpush.msra.mxu0 0.0
        %1002 = vmatpush.msra.mxu0 0.0
        %1003 = vmatpush.msra.mxu0 0.0
        %1004 = vmatpush.msra.mxu0 %v859
        %1005 = vmatpush.msra.mxu0 %v858
        %1006 = vmatpush.msra.mxu0 %v857
        %1007 = vmatpush.msra.mxu0 %v856
        %1008 = vmatmul.f32.gmra.mxu0 %v981
        %v1009 = vpop.f32.mrf.mxu0
        %v1010 = vadd.f32 0.0, %v1009
        %1011 = vmatmul.f32.gmra.mxu0 %v984
        %v1012 = vpop.f32.mrf.mxu0
        %v1013 = vadd.f32 0.0, %v1012
        %1014 = vmatmul.f32.gmra.mxu0 %v987
        %v1015 = vpop.f32.mrf.mxu0
        %v1016 = vadd.f32 0.0, %v1015
        %1017 = vmatmul.f32.gmra.mxu0 %v990
        %v1018 = vpop.f32.mrf.mxu0
        %v1019 = vadd.f32 0.0, %v1018
        %1020 = vdwg.mxu0
        %1021 = vmatpush.msra.mxu0 0.0
        %1022 = vmatpush.msra.mxu0 0.0
        %1023 = vmatpush.msra.mxu0 0.0
        %1024 = vmatpush.msra.mxu0 0.0
        %1025 = vmatpush.msra.mxu0 0.0
        %1026 = vmatpush.msra.mxu0 0.0
        %1027 = vmatpush.msra.mxu0 0.0
        %1028 = vmatpush.msra.mxu0 0.0
        %1029 = vmatpush.msra.mxu0 0.0
        %1030 = vmatpush.msra.mxu0 0.0
        %1031 = vmatpush.msra.mxu0 0.0
        %1032 = vmatpush.msra.mxu0 0.0
        %1033 = vmatpush.msra.mxu0 0.0
        %1034 = vmatpush.msra.mxu0 0.0
        %1035 = vmatpush.msra.mxu0 0.0
        %1036 = vmatpush.msra.mxu0 %v846
        %1037 = vmatmul.f32.gmra.mxu0 %v862
        %v1038 = vpop.f32.mrf.mxu0
        %v1039 = vadd.f32 0.0, %v1038
        %1040 = vmatmul.f32.gmra.mxu0 %v865
        %v1041 = vpop.f32.mrf.mxu0
        %v1042 = vadd.f32 0.0, %v1041
        %1043 = vmatmul.f32.gmra.mxu0 %v868
        %v1044 = vpop.f32.mrf.mxu0
        %v1045 = vadd.f32 0.0, %v1044
        %1046 = vmatmul.f32.gmra.mxu0 %v871
        %v1047 = vpop.f32.mrf.mxu0
        %v1048 = vadd.f32 0.0, %v1047
        %1049 = vdwg.mxu0
        %v1050 = vmul.f32 %v1039, %v852
        %v1051 = vmul.f32 %v1042, %v853
        %v1052 = vmul.f32 %v1045, %v854
        %v1053 = vmul.f32 %v1048, %v855
        %v1055 = vsel %vm760, %v1050, 0
        %v1058 = vsel %vm760, %v1051, 0
        %v1061 = vsel %vm760, %v1052, 0
        %v1064 = vsel %vm760, %v1053, 0
        %1066 = vmatpush.msra.mxu0 0.0
        %1067 = vmatpush.msra.mxu0 0.0
        %1068 = vmatpush.msra.mxu0 0.0
        %1069 = vmatpush.msra.mxu0 0.0
        %1070 = vmatpush.msra.mxu0 0.0
        %1071 = vmatpush.msra.mxu0 0.0
        %1072 = vmatpush.msra.mxu0 0.0
        %1073 = vmatpush.msra.mxu0 0.0
        %1074 = vmatpush.msra.mxu0 0.0
        %1075 = vmatpush.msra.mxu0 0.0
        %1076 = vmatpush.msra.mxu0 0.0
        %1077 = vmatpush.msra.mxu0 0.0
        %1078 = vmatpush.msra.mxu0 %v859
        %1079 = vmatpush.msra.mxu0 %v858
        %1080 = vmatpush.msra.mxu0 %v857
        %1081 = vmatpush.msra.mxu0 %v856
        %1082 = vmatmul.f32.gmra.mxu0 %v1055
        %v1083 = vpop.f32.mrf.mxu0
        %v1084 = vadd.f32 0.0, %v1083
        %1085 = vmatmul.f32.gmra.mxu0 %v1058
        %v1086 = vpop.f32.mrf.mxu0
        %v1087 = vadd.f32 0.0, %v1086
        %1088 = vmatmul.f32.gmra.mxu0 %v1061
        %v1089 = vpop.f32.mrf.mxu0
        %v1090 = vadd.f32 0.0, %v1089
        %1091 = vmatmul.f32.gmra.mxu0 %v1064
        %v1092 = vpop.f32.mrf.mxu0
        %v1093 = vadd.f32 0.0, %v1092
        %1094 = vdwg.mxu0
        %v1096 = vsel %vm860, %v936, 0
        %v1099 = vsel %vm860, %v939, 0
        %v1102 = vsel %vm860, %v942, 0
        %v1105 = vsel %vm860, %v945, 0
        %v1108 = vsel %vm860, %v1010, 0
        %v1111 = vsel %vm860, %v1013, 0
        %v1114 = vsel %vm860, %v1016, 0
        %v1117 = vsel %vm860, %v1019, 0
        %1119 = vmatpush.xpose.msra.mxu0 0.0
        %1120 = vmatpush.xpose.msra.mxu0 0.0
        %1121 = vmatpush.xpose.msra.mxu0 0.0
        %1122 = vmatpush.xpose.msra.mxu0 0.0
        %1123 = vmatpush.xpose.msra.mxu0 0.0
        %1124 = vmatpush.xpose.msra.mxu0 0.0
        %1125 = vmatpush.xpose.msra.mxu0 0.0
        %1126 = vmatpush.xpose.msra.mxu0 0.0
        %1127 = vmatpush.xpose.msra.mxu0 0.0
        %1128 = vmatpush.xpose.msra.mxu0 0.0
        %1129 = vmatpush.xpose.msra.mxu0 0.0
        %1130 = vmatpush.xpose.msra.mxu0 0.0
        %1131 = vmatpush.xpose.msra.mxu0 %v1117
        %1132 = vmatpush.xpose.msra.mxu0 %v1114
        %1133 = vmatpush.xpose.msra.mxu0 %v1111
        %1134 = vmatpush.xpose.msra.mxu0 %v1108
        %1135 = vmatmul.f32.gmra.mxu0 %v1096
        %v1136 = vpop.f32.mrf.mxu0
        %v1137 = vadd.f32 0.0, %v1136
        %1138 = vmatmul.f32.gmra.mxu0 %v1099
        %v1139 = vpop.f32.mrf.mxu0
        %v1140 = vadd.f32 0.0, %v1139
        %1141 = vmatmul.f32.gmra.mxu0 %v1102
        %v1142 = vpop.f32.mrf.mxu0
        %v1143 = vadd.f32 0.0, %v1142
        %1144 = vmatmul.f32.gmra.mxu0 %v1105
        %v1145 = vpop.f32.mrf.mxu0
        %v1146 = vadd.f32 0.0, %v1145
        %1147 = vdwg.mxu0
        %v1148 = vld [vmem:[#allocation17] sm:$0xff]
        %v1149 = vld [vmem:[#allocation17 + $0x8] sm:$0xff]
        %v1150 = vld [vmem:[#allocation17 + $0x10] sm:$0xff]
        %v1151 = vld [vmem:[#allocation17 + $0x18] sm:$0xff]
        %vm1152 = vcmp.gt.f32.partialorder %v1148, 0.5
        %vm1153 = vcmp.gt.f32.partialorder %v1149, 0.5
        %vm1154 = vcmp.gt.f32.partialorder %v1150, 0.5
        %vm1155 = vcmp.gt.f32.partialorder %v1151, 0.5
        %v1156 = vsel %vm1152, %v1137, -inf
        %v1157 = vsel %vm1153, %v1140, -inf
        %v1158 = vsel %vm1154, %v1143, -inf
        %v1159 = vsel %vm1155, %v1146, -inf
        %v1160 = vlaneseq
        %v1161 = vand.u32 %v1160, 127
        %v1162 = vsel %vm760, %v1156, -inf
        %1163 = vmax.xlane.f32.xlu0 %v1162
        %v1164 = vpop.xlane.xlu0 %1163
        %v1165 = vsel %vm760, %v1157, -inf
        %1166 = vmax.xlane.f32.xlu0 %v1165
        %v1167 = vpop.xlane.xlu0 %1166
        %v1168 = vsel %vm760, %v1158, -inf
        %1169 = vmax.xlane.f32.xlu0 %v1168
        %v1170 = vpop.xlane.xlu0 %1169
        %v1171 = vsel %vm760, %v1159, -inf
        %1172 = vmax.xlane.f32.xlu0 %v1171
        %v1173 = vpop.xlane.xlu0 %1172
        %vm1174 = vcmp.eq.f32.partialorder %v1156, %v1164
        %vm1175 = vcmp.eq.f32.partialorder %v1157, %v1167
        %vm1176 = vcmp.eq.f32.partialorder %v1158, %v1170
        %vm1177 = vcmp.eq.f32.partialorder %v1159, %v1173
        %v1178 = vsel %vm1174, %v1161, 32
        %v1179 = vsel %vm1175, %v1161, 32
        %v1180 = vsel %vm1176, %v1161, 32
        %v1181 = vsel %vm1177, %v1161, 32
        %v1182 = vsel %vm760, %v1178, 2147483647
        %v1183 = vand.u32 %v1182, 65535
        %v1184 = vshra.s32 %v1182, 16
        %v1185 = vcvt.s32.f32 %v1183
        %v1186 = vcvt.s32.f32 %v1184
        %1187 = vmin.xlane.f32.xlu0 %v1186
        %v1188 = vpop.xlane.xlu0 %1187
        %vm1189 = vcmp.eq.f32.partialorder %v1186, %v1188
        %v1190 = vsel %vm1189, %v1185, inf
        %1191 = vmin.xlane.f32.xlu0 %v1190
        %v1192 = vpop.xlane.xlu0 %1191
        %v1193 = vcvt.f32.s32 %v1192
        %v1194 = vcvt.f32.s32 %v1188
        %v1195 = vshll.u32 %v1194, 16
        %v1196 = vadd.s32 %v1195, %v1193
        %v1197 = vsel %vm760, %v1179, 2147483647
        %v1198 = vand.u32 %v1197, 65535
        %v1199 = vshra.s32 %v1197, 16
        %v1200 = vcvt.s32.f32 %v1198
        %v1201 = vcvt.s32.f32 %v1199
        %1202 = vmin.xlane.f32.xlu0 %v1201
        %v1203 = vpop.xlane.xlu0 %1202
        %vm1204 = vcmp.eq.f32.partialorder %v1201, %v1203
        %v1205 = vsel %vm1204, %v1200, inf
        %1206 = vmin.xlane.f32.xlu0 %v1205
        %v1207 = vpop.xlane.xlu0 %1206
        %v1208 = vcvt.f32.s32 %v1207
        %v1209 = vcvt.f32.s32 %v1203
        %v1210 = vshll.u32 %v1209, 16
        %v1211 = vadd.s32 %v1210, %v1208
        %v1212 = vsel %vm760, %v1180, 2147483647
        %v1213 = vand.u32 %v1212, 65535
        %v1214 = vshra.s32 %v1212, 16
        %v1215 = vcvt.s32.f32 %v1213
        %v1216 = vcvt.s32.f32 %v1214
        %1217 = vmin.xlane.f32.xlu0 %v1216
        %v1218 = vpop.xlane.xlu0 %1217
        %vm1219 = vcmp.eq.f32.partialorder %v1216, %v1218
        %v1220 = vsel %vm1219, %v1215, inf
        %1221 = vmin.xlane.f32.xlu0 %v1220
        %v1222 = vpop.xlane.xlu0 %1221
        %v1223 = vcvt.f32.s32 %v1222
        %v1224 = vcvt.f32.s32 %v1218
        %v1225 = vshll.u32 %v1224, 16
        %v1226 = vadd.s32 %v1225, %v1223
        %v1227 = vsel %vm760, %v1181, 2147483647
        %v1228 = vand.u32 %v1227, 65535
        %v1229 = vshra.s32 %v1227, 16
        %v1230 = vcvt.s32.f32 %v1228
        %v1231 = vcvt.s32.f32 %v1229
        %1232 = vmin.xlane.f32.xlu0 %v1231
        %v1233 = vpop.xlane.xlu0 %1232
        %vm1234 = vcmp.eq.f32.partialorder %v1231, %v1233
        %v1235 = vsel %vm1234, %v1230, inf
        %1236 = vmin.xlane.f32.xlu0 %v1235
        %v1237 = vpop.xlane.xlu0 %1236
        %v1238 = vcvt.f32.s32 %v1237
        %v1239 = vcvt.f32.s32 %v1233
        %v1240 = vshll.u32 %v1239, 16
        %v1241 = vadd.s32 %v1240, %v1238
        %vm1242 = vcmp.eq.s32.totalorder %v1161, %v1196
        %vm1243 = vcmp.eq.s32.totalorder %v1161, %v1211
        %vm1244 = vcmp.eq.s32.totalorder %v1161, %v1226
        %vm1245 = vcmp.eq.s32.totalorder %v1161, %v1241
        %v1246 = vsel %vm1242, -inf, %v1156
        %v1247 = vsel %vm1243, -inf, %v1157
        %v1248 = vsel %vm1244, -inf, %v1158
        %v1249 = vsel %vm1245, -inf, %v1159
        %v1250 = vsel %vm760, %v1246, -inf
        %1251 = vmax.xlane.f32.xlu0 %v1250
        %v1252 = vpop.xlane.xlu0 %1251
        %v1253 = vsel %vm760, %v1247, -inf
        %1254 = vmax.xlane.f32.xlu0 %v1253
        %v1255 = vpop.xlane.xlu0 %1254
        %v1256 = vsel %vm760, %v1248, -inf
        %1257 = vmax.xlane.f32.xlu0 %v1256
        %v1258 = vpop.xlane.xlu0 %1257
        %v1259 = vsel %vm760, %v1249, -inf
        %1260 = vmax.xlane.f32.xlu0 %v1259
        %v1261 = vpop.xlane.xlu0 %1260
        %vm1262 = vcmp.eq.f32.partialorder %v1246, %v1252
        %vm1263 = vcmp.eq.f32.partialorder %v1247, %v1255
        %vm1264 = vcmp.eq.f32.partialorder %v1248, %v1258
        %vm1265 = vcmp.eq.f32.partialorder %v1249, %v1261
        %v1266 = vsel %vm1262, %v1161, 32
        %v1267 = vsel %vm1263, %v1161, 32
        %v1268 = vsel %vm1264, %v1161, 32
        %v1269 = vsel %vm1265, %v1161, 32
        %v1270 = vsel %vm760, %v1266, 2147483647
        %v1271 = vand.u32 %v1270, 65535
        %v1272 = vshra.s32 %v1270, 16
        %v1273 = vcvt.s32.f32 %v1271
        %v1274 = vcvt.s32.f32 %v1272
        %1275 = vmin.xlane.f32.xlu0 %v1274
        %v1276 = vpop.xlane.xlu0 %1275
        %vm1277 = vcmp.eq.f32.partialorder %v1274, %v1276
        %v1278 = vsel %vm1277, %v1273, inf
        %1279 = vmin.xlane.f32.xlu0 %v1278
        %v1280 = vpop.xlane.xlu0 %1279
        %v1281 = vcvt.f32.s32 %v1280
        %v1282 = vcvt.f32.s32 %v1276
        %v1283 = vshll.u32 %v1282, 16
        %v1284 = vadd.s32 %v1283, %v1281
        %v1285 = vsel %vm760, %v1267, 2147483647
        %v1286 = vand.u32 %v1285, 65535
        %v1287 = vshra.s32 %v1285, 16
        %v1288 = vcvt.s32.f32 %v1286
        %v1289 = vcvt.s32.f32 %v1287
        %1290 = vmin.xlane.f32.xlu0 %v1289
        %v1291 = vpop.xlane.xlu0 %1290
        %vm1292 = vcmp.eq.f32.partialorder %v1289, %v1291
        %v1293 = vsel %vm1292, %v1288, inf
        %1294 = vmin.xlane.f32.xlu0 %v1293
        %v1295 = vpop.xlane.xlu0 %1294
        %v1296 = vcvt.f32.s32 %v1295
        %v1297 = vcvt.f32.s32 %v1291
        %v1298 = vshll.u32 %v1297, 16
        %v1299 = vadd.s32 %v1298, %v1296
        %v1300 = vsel %vm760, %v1268, 2147483647
        %v1301 = vand.u32 %v1300, 65535
        %v1302 = vshra.s32 %v1300, 16
        %v1303 = vcvt.s32.f32 %v1301
        %v1304 = vcvt.s32.f32 %v1302
        %1305 = vmin.xlane.f32.xlu0 %v1304
        %v1306 = vpop.xlane.xlu0 %1305
        %vm1307 = vcmp.eq.f32.partialorder %v1304, %v1306
        %v1308 = vsel %vm1307, %v1303, inf
        %1309 = vmin.xlane.f32.xlu0 %v1308
        %v1310 = vpop.xlane.xlu0 %1309
        %v1311 = vcvt.f32.s32 %v1310
        %v1312 = vcvt.f32.s32 %v1306
        %v1313 = vshll.u32 %v1312, 16
        %v1314 = vadd.s32 %v1313, %v1311
        %v1315 = vsel %vm760, %v1269, 2147483647
        %v1316 = vand.u32 %v1315, 65535
        %v1317 = vshra.s32 %v1315, 16
        %v1318 = vcvt.s32.f32 %v1316
        %v1319 = vcvt.s32.f32 %v1317
        %1320 = vmin.xlane.f32.xlu0 %v1319
        %v1321 = vpop.xlane.xlu0 %1320
        %vm1322 = vcmp.eq.f32.partialorder %v1319, %v1321
        %v1323 = vsel %vm1322, %v1318, inf
        %1324 = vmin.xlane.f32.xlu0 %v1323
        %v1325 = vpop.xlane.xlu0 %1324
        %v1326 = vcvt.f32.s32 %v1325
        %v1327 = vcvt.f32.s32 %v1321
        %v1328 = vshll.u32 %v1327, 16
        %v1329 = vadd.s32 %v1328, %v1326
        %vm1330 = vcmp.eq.s32.totalorder %v1161, %v1284
        %vm1331 = vcmp.eq.s32.totalorder %v1161, %v1299
        %vm1332 = vcmp.eq.s32.totalorder %v1161, %v1314
        %vm1333 = vcmp.eq.s32.totalorder %v1161, %v1329
        %vm1334 = vmor %vm1242, %vm1330
        %vm1335 = vmor %vm1243, %vm1331
        %vm1336 = vmor %vm1244, %vm1332
        %vm1337 = vmor %vm1245, %vm1333
        %v1338 = vsel %vm1330, -inf, %v1246
        %v1339 = vsel %vm1331, -inf, %v1247
        %v1340 = vsel %vm1332, -inf, %v1248
        %v1341 = vsel %vm1333, -inf, %v1249
        %v1342 = vsel %vm760, %v1338, -inf
        %1343 = vmax.xlane.f32.xlu0 %v1342
        %v1344 = vpop.xlane.xlu0 %1343
        %v1345 = vsel %vm760, %v1339, -inf
        %1346 = vmax.xlane.f32.xlu0 %v1345
        %v1347 = vpop.xlane.xlu0 %1346
        %v1348 = vsel %vm760, %v1340, -inf
        %1349 = vmax.xlane.f32.xlu0 %v1348
        %v1350 = vpop.xlane.xlu0 %1349
        %v1351 = vsel %vm760, %v1341, -inf
        %1352 = vmax.xlane.f32.xlu0 %v1351
        %v1353 = vpop.xlane.xlu0 %1352
        %vm1354 = vcmp.eq.f32.partialorder %v1338, %v1344
        %vm1355 = vcmp.eq.f32.partialorder %v1339, %v1347
        %vm1356 = vcmp.eq.f32.partialorder %v1340, %v1350
        %vm1357 = vcmp.eq.f32.partialorder %v1341, %v1353
        %v1358 = vsel %vm1354, %v1161, 32
        %v1359 = vsel %vm1355, %v1161, 32
        %v1360 = vsel %vm1356, %v1161, 32
        %v1361 = vsel %vm1357, %v1161, 32
        %v1362 = vsel %vm760, %v1358, 2147483647
        %v1363 = vand.u32 %v1362, 65535
        %v1364 = vshra.s32 %v1362, 16
        %v1365 = vcvt.s32.f32 %v1363
        %v1366 = vcvt.s32.f32 %v1364
        %1367 = vmin.xlane.f32.xlu0 %v1366
        %v1368 = vpop.xlane.xlu0 %1367
        %vm1369 = vcmp.eq.f32.partialorder %v1366, %v1368
        %v1370 = vsel %vm1369, %v1365, inf
        %1371 = vmin.xlane.f32.xlu0 %v1370
        %v1372 = vpop.xlane.xlu0 %1371
        %v1373 = vcvt.f32.s32 %v1372
        %v1374 = vcvt.f32.s32 %v1368
        %v1375 = vshll.u32 %v1374, 16
        %v1376 = vadd.s32 %v1375, %v1373
        %v1377 = vsel %vm760, %v1359, 2147483647
        %v1378 = vand.u32 %v1377, 65535
        %v1379 = vshra.s32 %v1377, 16
        %v1380 = vcvt.s32.f32 %v1378
        %v1381 = vcvt.s32.f32 %v1379
        %1382 = vmin.xlane.f32.xlu0 %v1381
        %v1383 = vpop.xlane.xlu0 %1382
        %vm1384 = vcmp.eq.f32.partialorder %v1381, %v1383
        %v1385 = vsel %vm1384, %v1380, inf
        %1386 = vmin.xlane.f32.xlu0 %v1385
        %v1387 = vpop.xlane.xlu0 %1386
        %v1388 = vcvt.f32.s32 %v1387
        %v1389 = vcvt.f32.s32 %v1383
        %v1390 = vshll.u32 %v1389, 16
        %v1391 = vadd.s32 %v1390, %v1388
        %v1392 = vsel %vm760, %v1360, 2147483647
        %v1393 = vand.u32 %v1392, 65535
        %v1394 = vshra.s32 %v1392, 16
        %v1395 = vcvt.s32.f32 %v1393
        %v1396 = vcvt.s32.f32 %v1394
        %1397 = vmin.xlane.f32.xlu0 %v1396
        %v1398 = vpop.xlane.xlu0 %1397
        %vm1399 = vcmp.eq.f32.partialorder %v1396, %v1398
        %v1400 = vsel %vm1399, %v1395, inf
        %1401 = vmin.xlane.f32.xlu0 %v1400
        %v1402 = vpop.xlane.xlu0 %1401
        %v1403 = vcvt.f32.s32 %v1402
        %v1404 = vcvt.f32.s32 %v1398
        %v1405 = vshll.u32 %v1404, 16
        %v1406 = vadd.s32 %v1405, %v1403
        %v1407 = vsel %vm760, %v1361, 2147483647
        %v1408 = vand.u32 %v1407, 65535
        %v1409 = vshra.s32 %v1407, 16
        %v1410 = vcvt.s32.f32 %v1408
        %v1411 = vcvt.s32.f32 %v1409
        %1412 = vmin.xlane.f32.xlu0 %v1411
        %v1413 = vpop.xlane.xlu0 %1412
        %vm1414 = vcmp.eq.f32.partialorder %v1411, %v1413
        %v1415 = vsel %vm1414, %v1410, inf
        %1416 = vmin.xlane.f32.xlu0 %v1415
        %v1417 = vpop.xlane.xlu0 %1416
        %v1418 = vcvt.f32.s32 %v1417
        %v1419 = vcvt.f32.s32 %v1413
        %v1420 = vshll.u32 %v1419, 16
        %v1421 = vadd.s32 %v1420, %v1418
        %vm1422 = vcmp.eq.s32.totalorder %v1161, %v1376
        %vm1423 = vcmp.eq.s32.totalorder %v1161, %v1391
        %vm1424 = vcmp.eq.s32.totalorder %v1161, %v1406
        %vm1425 = vcmp.eq.s32.totalorder %v1161, %v1421
        %vm1426 = vmor %vm1334, %vm1422
        %vm1427 = vmor %vm1335, %vm1423
        %vm1428 = vmor %vm1336, %vm1424
        %vm1429 = vmor %vm1337, %vm1425
        %v1430 = vsel %vm1422, -inf, %v1338
        %v1431 = vsel %vm1423, -inf, %v1339
        %v1432 = vsel %vm1424, -inf, %v1340
        %v1433 = vsel %vm1425, -inf, %v1341
        %v1434 = vsel %vm760, %v1430, -inf
        %1435 = vmax.xlane.f32.xlu0 %v1434
        %v1436 = vpop.xlane.xlu0 %1435
        %v1437 = vsel %vm760, %v1431, -inf
        %1438 = vmax.xlane.f32.xlu0 %v1437
        %v1439 = vpop.xlane.xlu0 %1438
        %v1440 = vsel %vm760, %v1432, -inf
        %1441 = vmax.xlane.f32.xlu0 %v1440
        %v1442 = vpop.xlane.xlu0 %1441
        %v1443 = vsel %vm760, %v1433, -inf
        %1444 = vmax.xlane.f32.xlu0 %v1443
        %v1445 = vpop.xlane.xlu0 %1444
        %vm1446 = vcmp.eq.f32.partialorder %v1430, %v1436
        %vm1447 = vcmp.eq.f32.partialorder %v1431, %v1439
        %vm1448 = vcmp.eq.f32.partialorder %v1432, %v1442
        %vm1449 = vcmp.eq.f32.partialorder %v1433, %v1445
        %v1450 = vsel %vm1446, %v1161, 32
        %v1451 = vsel %vm1447, %v1161, 32
        %v1452 = vsel %vm1448, %v1161, 32
        %v1453 = vsel %vm1449, %v1161, 32
        %v1454 = vsel %vm760, %v1450, 2147483647
        %v1455 = vand.u32 %v1454, 65535
        %v1456 = vshra.s32 %v1454, 16
        %v1457 = vcvt.s32.f32 %v1455
        %v1458 = vcvt.s32.f32 %v1456
        %1459 = vmin.xlane.f32.xlu0 %v1458
        %v1460 = vpop.xlane.xlu0 %1459
        %vm1461 = vcmp.eq.f32.partialorder %v1458, %v1460
        %v1462 = vsel %vm1461, %v1457, inf
        %1463 = vmin.xlane.f32.xlu0 %v1462
        %v1464 = vpop.xlane.xlu0 %1463
        %v1465 = vcvt.f32.s32 %v1464
        %v1466 = vcvt.f32.s32 %v1460
        %v1467 = vshll.u32 %v1466, 16
        %v1468 = vadd.s32 %v1467, %v1465
        %v1469 = vsel %vm760, %v1451, 2147483647
        %v1470 = vand.u32 %v1469, 65535
        %v1471 = vshra.s32 %v1469, 16
        %v1472 = vcvt.s32.f32 %v1470
        %v1473 = vcvt.s32.f32 %v1471
        %1474 = vmin.xlane.f32.xlu0 %v1473
        %v1475 = vpop.xlane.xlu0 %1474
        %vm1476 = vcmp.eq.f32.partialorder %v1473, %v1475
        %v1477 = vsel %vm1476, %v1472, inf
        %1478 = vmin.xlane.f32.xlu0 %v1477
        %v1479 = vpop.xlane.xlu0 %1478
        %v1480 = vcvt.f32.s32 %v1479
        %v1481 = vcvt.f32.s32 %v1475
        %v1482 = vshll.u32 %v1481, 16
        %v1483 = vadd.s32 %v1482, %v1480
        %v1484 = vsel %vm760, %v1452, 2147483647
        %v1485 = vand.u32 %v1484, 65535
        %v1486 = vshra.s32 %v1484, 16
        %v1487 = vcvt.s32.f32 %v1485
        %v1488 = vcvt.s32.f32 %v1486
        %1489 = vmin.xlane.f32.xlu0 %v1488
        %v1490 = vpop.xlane.xlu0 %1489
        %vm1491 = vcmp.eq.f32.partialorder %v1488, %v1490
        %v1492 = vsel %vm1491, %v1487, inf
        %1493 = vmin.xlane.f32.xlu0 %v1492
        %v1494 = vpop.xlane.xlu0 %1493
        %v1495 = vcvt.f32.s32 %v1494
        %v1496 = vcvt.f32.s32 %v1490
        %v1497 = vshll.u32 %v1496, 16
        %v1498 = vadd.s32 %v1497, %v1495
        %v1499 = vsel %vm760, %v1453, 2147483647
        %v1500 = vand.u32 %v1499, 65535
        %v1501 = vshra.s32 %v1499, 16
        %v1502 = vcvt.s32.f32 %v1500
        %v1503 = vcvt.s32.f32 %v1501
        %1504 = vmin.xlane.f32.xlu0 %v1503
        %v1505 = vpop.xlane.xlu0 %1504
        %vm1506 = vcmp.eq.f32.partialorder %v1503, %v1505
        %v1507 = vsel %vm1506, %v1502, inf
        %1508 = vmin.xlane.f32.xlu0 %v1507
        %v1509 = vpop.xlane.xlu0 %1508
        %v1510 = vcvt.f32.s32 %v1509
        %v1511 = vcvt.f32.s32 %v1505
        %v1512 = vshll.u32 %v1511, 16
        %v1513 = vadd.s32 %v1512, %v1510
        %vm1514 = vcmp.eq.s32.totalorder %v1161, %v1468
        %vm1515 = vcmp.eq.s32.totalorder %v1161, %v1483
        %vm1516 = vcmp.eq.s32.totalorder %v1161, %v1498
        %vm1517 = vcmp.eq.s32.totalorder %v1161, %v1513
        %vm1518 = vmor %vm1426, %vm1514
        %vm1519 = vmor %vm1427, %vm1515
        %vm1520 = vmor %vm1428, %vm1516
        %vm1521 = vmor %vm1429, %vm1517
        %v1522 = vsel %vm1518, %v1156, -inf
        %v1523 = vsel %vm1519, %v1157, -inf
        %v1524 = vsel %vm1520, %v1158, -inf
        %v1525 = vsel %vm1521, %v1159, -inf
        %v1526 = vsel %vm760, %v1522, -inf
        %1527 = vmax.xlane.f32.xlu0 %v1526
        %v1528 = vpop.xlane.xlu0 %1527
        %v1529 = vsel %vm760, %v1523, -inf
        %1530 = vmax.xlane.f32.xlu0 %v1529
        %v1531 = vpop.xlane.xlu0 %1530
        %v1532 = vsel %vm760, %v1524, -inf
        %1533 = vmax.xlane.f32.xlu0 %v1532
        %v1534 = vpop.xlane.xlu0 %1533
        %v1535 = vsel %vm760, %v1525, -inf
        %1536 = vmax.xlane.f32.xlu0 %v1535
        %v1537 = vpop.xlane.xlu0 %1536
        %v1538 = vsub.f32 %v1522, %v1528
        %v1539 = vsub.f32 %v1523, %v1531
        %v1540 = vsub.f32 %v1524, %v1534
        %v1541 = vsub.f32 %v1525, %v1537
        %v1542 = vmul.f32 %v1538, 1.442695
        %v1543 = vpow.pop %v1542
        %v1544 = vmul.f32 %v1539, 1.442695
        %v1545 = vpow.pop %v1544
        %v1546 = vmul.f32 %v1540, 1.442695
        %v1547 = vpow.pop %v1546
        %v1548 = vmul.f32 %v1541, 1.442695
        %v1549 = vpow.pop %v1548
        %v1550 = vsel %vm1518, %v1543, 0.0
        %v1551 = vsel %vm1519, %v1545, 0.0
        %v1552 = vsel %vm1520, %v1547, 0.0
        %v1553 = vsel %vm1521, %v1549, 0.0
        %v1554 = vsel %vm760, %v1550, 0.0
        %1555 = vadd.xlane.f32.xlu0 %v1554
        %v1556 = vpop.xlane.xlu0 %1555
        %v1557 = vsel %vm760, %v1551, 0.0
        %1558 = vadd.xlane.f32.xlu0 %v1557
        %v1559 = vpop.xlane.xlu0 %1558
        %v1560 = vsel %vm760, %v1552, 0.0
        %1561 = vadd.xlane.f32.xlu0 %v1560
        %v1562 = vpop.xlane.xlu0 %1561
        %v1563 = vsel %vm760, %v1553, 0.0
        %1564 = vadd.xlane.f32.xlu0 %v1563
        %v1565 = vpop.xlane.xlu0 %1564
        %v1566 = vrcp.pop %v1556
        %v1567 = vmul.f32 %v1556, %v1566
        %v1568 = vsub.f32 1.0, %v1567
        %v1569 = vmul.f32 %v1566, %v1568
        %v1570 = vadd.f32 %v1566, %v1569
        %vm1571 = vweird.f32 %v1556
        %vm1572 = vweird.f32 %v1566
        %vm1573 = vmor %vm1571, %vm1572
        %v1574 = vsel %vm1573, %v1566, %v1570
        %v1575 = vand.u32 2147483647, %v1556
        %vm1576 = vcmp.eq.f32.partialorder %v1575, 8.507059e+37
        %v1577 = vand.u32 %v1556, 2147483648
        %v1578 = vor.u32 1.1754944e-38, %v1577
        %v1579 = vsel %vm1576, %v1578, %v1574
        %v1580 = vmul.f32 %v1550, %v1579
        %v1581 = vrcp.pop %v1559
        %v1582 = vmul.f32 %v1559, %v1581
        %v1583 = vsub.f32 1.0, %v1582
        %v1584 = vmul.f32 %v1581, %v1583
        %v1585 = vadd.f32 %v1581, %v1584
        %vm1586 = vweird.f32 %v1559
        %vm1587 = vweird.f32 %v1581
        %vm1588 = vmor %vm1586, %vm1587
        %v1589 = vsel %vm1588, %v1581, %v1585
        %v1590 = vand.u32 2147483647, %v1559
        %vm1591 = vcmp.eq.f32.partialorder %v1590, 8.507059e+37
        %v1592 = vand.u32 %v1559, 2147483648
        %v1593 = vor.u32 1.1754944e-38, %v1592
        %v1594 = vsel %vm1591, %v1593, %v1589
        %v1595 = vmul.f32 %v1551, %v1594
        %v1596 = vrcp.pop %v1562
        %v1597 = vmul.f32 %v1562, %v1596
        %v1598 = vsub.f32 1.0, %v1597
        %v1599 = vmul.f32 %v1596, %v1598
        %v1600 = vadd.f32 %v1596, %v1599
        %vm1601 = vweird.f32 %v1562
        %vm1602 = vweird.f32 %v1596
        %vm1603 = vmor %vm1601, %vm1602
        %v1604 = vsel %vm1603, %v1596, %v1600
        %v1605 = vand.u32 2147483647, %v1562
        %vm1606 = vcmp.eq.f32.partialorder %v1605, 8.507059e+37
        %v1607 = vand.u32 %v1562, 2147483648
        %v1608 = vor.u32 1.1754944e-38, %v1607
        %v1609 = vsel %vm1606, %v1608, %v1604
        %v1610 = vmul.f32 %v1552, %v1609
        %v1611 = vrcp.pop %v1565
        %v1612 = vmul.f32 %v1565, %v1611
        %v1613 = vsub.f32 1.0, %v1612
        %v1614 = vmul.f32 %v1611, %v1613
        %v1615 = vadd.f32 %v1611, %v1614
        %vm1616 = vweird.f32 %v1565
        %vm1617 = vweird.f32 %v1611
        %vm1618 = vmor %vm1616, %vm1617
        %v1619 = vsel %vm1618, %v1611, %v1615
        %v1620 = vand.u32 2147483647, %v1565
        %vm1621 = vcmp.eq.f32.partialorder %v1620, 8.507059e+37
        %v1622 = vand.u32 %v1565, 2147483648
        %v1623 = vor.u32 1.1754944e-38, %v1622
        %v1624 = vsel %vm1621, %v1623, %v1619
        %v1625 = vmul.f32 %v1553, %v1624
        %v1627 = vsel %vm760, %v1580, 0
        %v1630 = vsel %vm760, %v1595, 0
        %v1633 = vsel %vm760, %v1610, 0
        %v1636 = vsel %vm760, %v1625, 0
        %1638 = vmatpush.msra.mxu0 0.0
        %1639 = vmatpush.msra.mxu0 0.0
        %1640 = vmatpush.msra.mxu0 0.0
        %1641 = vmatpush.msra.mxu0 0.0
        %1642 = vmatpush.msra.mxu0 0.0
        %1643 = vmatpush.msra.mxu0 0.0
        %1644 = vmatpush.msra.mxu0 0.0
        %1645 = vmatpush.msra.mxu0 0.0
        %1646 = vmatpush.msra.mxu0 0.0
        %1647 = vmatpush.msra.mxu0 0.0
        %1648 = vmatpush.msra.mxu0 0.0
        %1649 = vmatpush.msra.mxu0 0.0
        %1650 = vmatpush.msra.mxu0 %v1093
        %1651 = vmatpush.msra.mxu0 %v1090
        %1652 = vmatpush.msra.mxu0 %v1087
        %1653 = vmatpush.msra.mxu0 %v1084
        %1654 = vmatmul.f32.gmra.mxu0 %v1627
        %v1655 = vpop.f32.mrf.mxu0
        %v1656 = vadd.f32 0.0, %v1655
        %1657 = vmatmul.f32.gmra.mxu0 %v1630
        %v1658 = vpop.f32.mrf.mxu0
        %v1659 = vadd.f32 0.0, %v1658
        %1660 = vmatmul.f32.gmra.mxu0 %v1633
        %v1661 = vpop.f32.mrf.mxu0
        %v1662 = vadd.f32 0.0, %v1661
        %1663 = vmatmul.f32.gmra.mxu0 %v1636
        %v1664 = vpop.f32.mrf.mxu0
        %v1665 = vadd.f32 0.0, %v1664
        %1666 = vdwg.mxu0
        %v1667 = vld [vmem:[#allocation16] sm:$0xff]
        %v1669 = vsel %vm860, %v1656, 0
        %v1672 = vsel %vm860, %v1659, 0
        %v1675 = vsel %vm860, %v1662, 0
        %v1678 = vsel %vm860, %v1665, 0
        %1680 = vmatpush.msra.mxu0 0.0
        %1681 = vmatpush.msra.mxu0 0.0
        %1682 = vmatpush.msra.mxu0 0.0
        %1683 = vmatpush.msra.mxu0 0.0
        %1684 = vmatpush.msra.mxu0 0.0
        %1685 = vmatpush.msra.mxu0 0.0
        %1686 = vmatpush.msra.mxu0 0.0
        %1687 = vmatpush.msra.mxu0 0.0
        %1688 = vmatpush.msra.mxu0 0.0
        %1689 = vmatpush.msra.mxu0 0.0
        %1690 = vmatpush.msra.mxu0 0.0
        %1691 = vmatpush.msra.mxu0 0.0
        %1692 = vmatpush.msra.mxu0 0.0
        %1693 = vmatpush.msra.mxu0 0.0
        %1694 = vmatpush.msra.mxu0 0.0
        %1695 = vmatpush.msra.mxu0 %v1667
        %1696 = vmatmul.f32.gmra.mxu0 %v1669
        %v1697 = vpop.f32.mrf.mxu0
        %v1698 = vadd.f32 0.0, %v1697
        %1699 = vmatmul.f32.gmra.mxu0 %v1672
        %v1700 = vpop.f32.mrf.mxu0
        %v1701 = vadd.f32 0.0, %v1700
        %1702 = vmatmul.f32.gmra.mxu0 %v1675
        %v1703 = vpop.f32.mrf.mxu0
        %v1704 = vadd.f32 0.0, %v1703
        %1705 = vmatmul.f32.gmra.mxu0 %v1678
        %v1706 = vpop.f32.mrf.mxu0
        %v1707 = vadd.f32 0.0, %v1706
        %1708 = vdwg.mxu0
        %v1709 = vld [vmem:[%s12] sm:$0xff]
        %v1710 = vmul.f32 %v1698, %v852
        %v1711 = vmul.f32 %v1701, %v853
        %v1712 = vmul.f32 %v1704, %v854
        %v1713 = vmul.f32 %v1707, %v855
        %v1715 = vsel %vm760, %v1709, 0
        %1717 = vmatpush.msra.mxu0 0.0
        %1718 = vmatpush.msra.mxu0 0.0
        %1719 = vmatpush.msra.mxu0 0.0
        %1720 = vmatpush.msra.mxu0 0.0
        %1721 = vmatpush.msra.mxu0 0.0
        %1722 = vmatpush.msra.mxu0 0.0
        %1723 = vmatpush.msra.mxu0 0.0
        %1724 = vmatpush.msra.mxu0 0.0
        %1725 = vmatpush.msra.mxu0 0.0
        %1726 = vmatpush.msra.mxu0 0.0
        %1727 = vmatpush.msra.mxu0 0.0
        %1728 = vmatpush.msra.mxu0 0.0
        %1729 = vmatpush.msra.mxu0 %v1713
        %1730 = vmatpush.msra.mxu0 %v1712
        %1731 = vmatpush.msra.mxu0 %v1711
        %1732 = vmatpush.msra.mxu0 %v1710
        %1733 = vmatmul.f32.gmra.mxu0 %v1715
        %v1734 = vpop.f32.mrf.mxu0
        %v1735 = vadd.f32 0.0, %v1734
        %1736 = vdwg.mxu0
        %v1737 = vld [vmem:[#allocation11] sm:$0xff]
        %v1738 = vld [vmem:[#allocation11 + $0x8] sm:$0xff]
        %v1739 = vld [vmem:[#allocation11 + $0x10] sm:$0xff]
        %v1740 = vld [vmem:[#allocation11 + $0x18] sm:$0xff]
        %v1741 = vld [vmem:[#allocation13] sm:$0x1]
        %v1743 = vperm.slane %v1741, 0
        %v1746 = vsel %vm760, %v1735, 0
        %1748 = vmatpush.msra.mxu0 0.0
        %1749 = vmatpush.msra.mxu0 0.0
        %1750 = vmatpush.msra.mxu0 0.0
        %1751 = vmatpush.msra.mxu0 0.0
        %1752 = vmatpush.msra.mxu0 0.0
        %1753 = vmatpush.msra.mxu0 0.0
        %1754 = vmatpush.msra.mxu0 0.0
        %1755 = vmatpush.msra.mxu0 0.0
        %1756 = vmatpush.msra.mxu0 0.0
        %1757 = vmatpush.msra.mxu0 0.0
        %1758 = vmatpush.msra.mxu0 0.0
        %1759 = vmatpush.msra.mxu0 0.0
        %1760 = vmatpush.msra.mxu0 %v1740
        %1761 = vmatpush.msra.mxu0 %v1739
        %1762 = vmatpush.msra.mxu0 %v1738
        %1763 = vmatpush.msra.mxu0 %v1737
        %1764 = vmatmul.f32.gmra.mxu0 %v1746
        %v1765 = vpop.f32.mrf.mxu0
        %v1766 = vadd.f32 %v1743, %v1765
        %1767 = vdwg.mxu0
        %1768 = vst.msk [vmem:[%s750] sm:$0xff] %vm760, %v1766
        %s1769 = sand.u32 %s421, 1
        %s1770 = scalar_lea.sflag [#allocation4], %s1769
        %s1771 = sand.u32 %s421, 1
        %s1772 = smul.addr %s1771, 8
        %s1773 = scalar_lea.vmem [#allocation19], %s1772
        // Predicated region
        $region129: #{tpu_custom_call.1} parent=87 // pred_check
          %p1774 = pneg %p431
        $region130: #{tpu_custom_call.1} parent=87 // pred_check_branch
          %1776 = sbr.rel (%p1774) target = $region132
        $region131: #{tpu_custom_call.1} parent=87 // pred_region
          %1778 = vsyncadd %s1770, 0
          %s1779 = smul.addr %s41, 8
          %s1780 = scalar_lea.hbm %s17, %s1779
          %s1782 = sshll.u32 %s1773, 4
          %s1783 = int_to_ptr.vmem [resolvable:$true] %s1782
          %s1784 = sshll.u32 %s1780, 4
          %s1785 = int_to_ptr.hbm [resolvable:$true] %s1784
          %1787 = dma.vmem_to_hbm [thread:$0]  %s1783, 128, %s1785, %s1770
        $region132: #{tpu_custom_call.1} parent=87 // pred_fallthru
          _
      $region88: #{tpu_custom_call.1} parent=5 // pred_fallthru
        _
      %p1788 = scmp.le.s32.totalorder 2, %s36
      // Predicated region
      $region133: #{tpu_custom_call.1} parent=5 // pred_check
        %p1789 = pneg %p1788
      $region134: #{tpu_custom_call.1} parent=5 // pred_check_branch
        %1791 = sbr.rel (%p1789) target = $region136
      $region135: #{tpu_custom_call.1} parent=5 // pred_region
        %s1792 = ssub.s32 %s36, 2
        // Predicated region
        $region137: #{tpu_custom_call.1} parent=135 // pred_check
          %p1793 = pneg %p437
        $region138: #{tpu_custom_call.1} parent=135 // pred_check_branch
          %1795 = sbr.rel (%p1793) target = $region140
        $region139: #{tpu_custom_call.1} parent=135 // pred_region
          %s1796 = sand.u32 %s422, 1
          %s1797 = scalar_lea.sflag [#allocation4], %s1796
          %s1798 = sand.u32 %s422, 1
          %s1799 = smul.addr %s1798, 8
          %s1800 = scalar_lea.vmem [#allocation19], %s1799
          %1802 = dma.done %s1797, 128
        $region140: #{tpu_custom_call.1} parent=135 // pred_fallthru
          _
      $region136: #{tpu_custom_call.1} parent=5 // pred_fallthru
        _
    $region6: #{tpu_custom_call.1} parent=1 // loop_footer
      %s40 = sadd.s32 1, %s36
    $region7: #{tpu_custom_call.1} parent=1 // loop_footer_branch
      %35 = sbr.rel target = $region3
    $region8: #{tpu_custom_call.1} parent=1 // loop_exit
      _
    %1803 = vsyncpa [#allocation3], 1
    %s1804 = scalar_lea.sflag [#allocation3], 1
    %1805 = vsyncpa %s1804, 1
    %1806 = vsyncpa [#allocation6], 1
    %s1807 = scalar_lea.sflag [#allocation6], 1
    %1808 = vsyncpa %s1807, 1
    %1809 = vsyncpa [#allocation9], 1
    %1810 = vsyncpa [#allocation12], 1
    %1811 = vsyncpa [#allocation15], 1
    %1812 = vsyncpa [#allocation18], 1
    %1813 = vsyncpa [#allocation4], 1
    %s1814 = scalar_lea.sflag [#allocation4], 1
    %1815 = vsyncpa %s1814, 1

</llo_original>
